<compile_context>
chip_gen: v7x
topology: tpu7x:2x2x1
jax: 0.10.0
libtpu: 0.0.40
codegen_flags: <defaults>
</compile_context>

<pallas_src>
import functools

import jax
import jax.numpy as jnp
import numpy as np
from jax.experimental import pallas as pl
from jax.experimental.pallas import tpu as pltpu


def _default_vmem_limit():
    """Generation-aware scoped-VMEM limit: ~75% of physical VMEM, fallback 48MiB."""
    cap = None
    try:
        info = pltpu.get_tpu_info()
        for attr in ("vmem_capacity_bytes", "vmem_size_bytes", "vmem_bytes"):
            if hasattr(info, attr):
                cap = int(getattr(info, attr))
                break
    except Exception:
        cap = None
    if not cap or cap <= 0:
        cap = 64 * 1024 * 1024  # conservative: v7x physical VMEM per TensorCore
    return int(cap * 3 // 4)


_VMEM_LIMIT = _default_vmem_limit()


def _gelu(x):
    # TODO(synk): HF BERT uses the erf-based GELU; tanh-approx used here
    # (EUP-friendly, numerically very close).  Reference below matches.
    c = np.sqrt(2.0 / np.pi).astype(np.float32)
    return 0.5 * x * (1.0 + jnp.tanh(c * (x + 0.044715 * x * x * x)))


def _pick_tile(dim, target, align):
    """Largest tile <= target that divides `dim` and is `align`-aligned,
    else the full dim (full-extent blocks are always legal)."""
    if dim <= target:
        return dim
    t = min(target, dim)
    t -= t % align
    while t >= align:
        if dim % t == 0:
            return t
        t -= align
    # TODO(synk): for awkward non-divisible dims this falls back to a single
    # full-extent block; pad the operand instead if such shapes ever appear.
    return dim


def _head_group(nh, dh):
    """Smallest head-group size hg (dividing nh) with hg*dh lane-aligned (x128);
    falls back to all heads (full-extent last dim is always a legal block)."""
    for hg in range(1, nh + 1):
        if nh % hg == 0 and (hg * dh) % 128 == 0:
            return hg
    return nh


# --------------------------------------------------------------------------
# Tiled dense (optionally fused activation)
# --------------------------------------------------------------------------
def _dense_kernel(x_ref, w_ref, b_ref, o_ref, acc_ref, *, activation, n_k):
    k = pl.program_id(2)

    @pl.when(k == 0)
    def _():
        acc_ref[...] = jnp.zeros_like(acc_ref)

    acc_ref[...] += jnp.dot(x_ref[...], w_ref[...],
                            preferred_element_type=jnp.float32)

    @pl.when(k == n_k - 1)
    def _():
        y = acc_ref[...] + b_ref[...]
        if activation == "gelu":
            y = _gelu(y)
        elif activation == "tanh":
            y = jnp.tanh(y)
        o_ref[...] = y.astype(o_ref.dtype)


def pallas_dense(x, w, b, activation=None, out_dtype=jnp.bfloat16,
                 tm=512, tn=1024, tk=1024):
    M, K = x.shape
    N = w.shape[1]
    tm = _pick_tile(M, tm, 16)    # 16-aligned: bf16 packs two rows/sublane
    tn = _pick_tile(N, tn, 128)
    tk = _pick_tile(K, tk, 128)   # target >= typical K -> single K step
    n_k = K // tk
    return pl.pallas_call(
        functools.partial(_dense_kernel, activation=activation, n_k=n_k),
        out_shape=jax.ShapeDtypeStruct((M, N), out_dtype),
        grid=(M // tm, N // tn, n_k),
        in_specs=[
            pl.BlockSpec((tm, tk), lambda i, j, k: (i, k)),
            pl.BlockSpec((tk, tn), lambda i, j, k: (k, j)),
            pl.BlockSpec((1, tn), lambda i, j, k: (0, j)),
        ],
        out_specs=pl.BlockSpec((tm, tn), lambda i, j, k: (i, j)),
        scratch_shapes=[pltpu.VMEM((tm, tn), jnp.float32)],
        compiler_params=pltpu.CompilerParams(
            dimension_semantics=("parallel", "parallel", "arbitrary"),
            vmem_limit_bytes=_VMEM_LIMIT),
    )(x.astype(jnp.bfloat16), w.astype(jnp.bfloat16),
      b.reshape(1, N).astype(jnp.float32))


# --------------------------------------------------------------------------
# Tiled dense + residual-add + LayerNorm fused in the epilogue
# --------------------------------------------------------------------------
def _dense_res_ln_kernel(x_ref, w_ref, b_ref, r_ref, g_ref, be_ref,
                         o_ref, acc_ref, *, n_k, eps):
    k = pl.program_id(1)

    @pl.when(k == 0)
    def _():
        acc_ref[...] = jnp.zeros_like(acc_ref)

    acc_ref[...] += jnp.dot(x_ref[...], w_ref[...],
                            preferred_element_type=jnp.float32)

    @pl.when(k == n_k - 1)
    def _():
        y = acc_ref[...] + b_ref[...] + r_ref[...].astype(jnp.float32)
        mean = jnp.mean(y, axis=-1, keepdims=True)
        var = jnp.mean(jnp.square(y - mean), axis=-1, keepdims=True)
        yn = (y - mean) * jax.lax.rsqrt(var + eps)
        o_ref[...] = (yn * g_ref[...] + be_ref[...]).astype(o_ref.dtype)


def pallas_dense_res_ln(x, w, b, residual, gamma, beta,
                        eps=1e-12, tm=512, tk=1024):
    M, K = x.shape
    N = w.shape[1]
    tm = _pick_tile(M, tm, 16)
    tk = _pick_tile(K, tk, 128)   # typically full K -> single epilogue
    n_k = K // tk
    return pl.pallas_call(
        functools.partial(_dense_res_ln_kernel, n_k=n_k, eps=eps),
        out_shape=jax.ShapeDtypeStruct((M, N), jnp.bfloat16),
        grid=(M // tm, n_k),
        in_specs=[
            pl.BlockSpec((tm, tk), lambda i, k: (i, k)),
            pl.BlockSpec((tk, N), lambda i, k: (k, 0)),
            pl.BlockSpec((1, N), lambda i, k: (0, 0)),
            pl.BlockSpec((tm, N), lambda i, k: (i, 0)),
            pl.BlockSpec((1, N), lambda i, k: (0, 0)),
            pl.BlockSpec((1, N), lambda i, k: (0, 0)),
        ],
        out_specs=pl.BlockSpec((tm, N), lambda i, k: (i, 0)),
        scratch_shapes=[pltpu.VMEM((tm, N), jnp.float32)],
        compiler_params=pltpu.CompilerParams(
            dimension_semantics=("parallel", "arbitrary"),
            vmem_limit_bytes=_VMEM_LIMIT),
    )(x.astype(jnp.bfloat16), w.astype(jnp.bfloat16),
      b.reshape(1, N).astype(jnp.float32),
      residual.astype(jnp.bfloat16),
      gamma.reshape(1, N).astype(jnp.float32),
      beta.reshape(1, N).astype(jnp.float32))


# --------------------------------------------------------------------------
# Fused FFN: LN(gelu(x@w1 + b1) @ w2 + b2 + residual)
# (tiles over the intermediate dim; the (M, I) intermediate never hits HBM)
# --------------------------------------------------------------------------
def _ffn_kernel(x_ref, w1_ref, b1_ref, w2_ref, b2_ref, r_ref, g_ref, be_ref,
                o_ref, acc_ref, *, n_l, eps):
    l = pl.program_id(1)

    @pl.when(l == 0)
    def _():
        acc_ref[...] = jnp.zeros_like(acc_ref)

    inter = jnp.dot(x_ref[...], w1_ref[...], preferred_element_type=jnp.float32)
    inter = _gelu(inter + b1_ref[...])
    acc_ref[...] += jnp.dot(inter.astype(jnp.bfloat16), w2_ref[...],
                            preferred_element_type=jnp.float32)

    @pl.when(l == n_l - 1)
    def _():
        y = acc_ref[...] + b2_ref[...] + r_ref[...].astype(jnp.float32)
        mean = jnp.mean(y, axis=-1, keepdims=True)
        var = jnp.mean(jnp.square(y - mean), axis=-1, keepdims=True)
        yn = (y - mean) * jax.lax.rsqrt(var + eps)
        o_ref[...] = (yn * g_ref[...] + be_ref[...]).astype(o_ref.dtype)


def pallas_ffn(x, w1, b1, w2, b2, residual, gamma, beta,
               eps=1e-12, tm=512, ti=1024):
    M, H = x.shape
    I = w1.shape[1]
    tm = _pick_tile(M, tm, 16)
    ti = _pick_tile(I, ti, 128)
    n_l = I // ti
    return pl.pallas_call(
        functools.partial(_ffn_kernel, n_l=n_l, eps=eps),
        out_shape=jax.ShapeDtypeStruct((M, H), jnp.bfloat16),
        grid=(M // tm, n_l),
        in_specs=[
            pl.BlockSpec((tm, H), lambda i, l: (i, 0)),
            pl.BlockSpec((H, ti), lambda i, l: (0, l)),
            pl.BlockSpec((1, ti), lambda i, l: (0, l)),
            pl.BlockSpec((ti, H), lambda i, l: (l, 0)),
            pl.BlockSpec((1, H), lambda i, l: (0, 0)),
            pl.BlockSpec((tm, H), lambda i, l: (i, 0)),
            pl.BlockSpec((1, H), lambda i, l: (0, 0)),
            pl.BlockSpec((1, H), lambda i, l: (0, 0)),
        ],
        out_specs=pl.BlockSpec((tm, H), lambda i, l: (i, 0)),
        scratch_shapes=[pltpu.VMEM((tm, H), jnp.float32)],
        compiler_params=pltpu.CompilerParams(
            dimension_semantics=("parallel", "arbitrary"),
            vmem_limit_bytes=_VMEM_LIMIT),
    )(x.astype(jnp.bfloat16), w1.astype(jnp.bfloat16),
      b1.reshape(1, I).astype(jnp.float32),
      w2.astype(jnp.bfloat16), b2.reshape(1, H).astype(jnp.float32),
      residual.astype(jnp.bfloat16),
      gamma.reshape(1, H).astype(jnp.float32),
      beta.reshape(1, H).astype(jnp.float32))


# --------------------------------------------------------------------------
# No-residual LayerNorm (embeddings).  Accepts bf16 input, f32 math in-kernel.
# --------------------------------------------------------------------------
def _ln_kernel(x_ref, g_ref, b_ref, o_ref, *, eps):
    x = x_ref[...].astype(jnp.float32)
    mean = jnp.mean(x, axis=-1, keepdims=True)
    var = jnp.mean(jnp.square(x - mean), axis=-1, keepdims=True)
    xn = (x - mean) * jax.lax.rsqrt(var + eps)
    o_ref[...] = (xn * g_ref[...] + b_ref[...]).astype(o_ref.dtype)


def pallas_layernorm(x, gamma, beta, eps=1e-12, tm=512):
    M, H = x.shape
    tm = _pick_tile(M, tm, 16)
    return pl.pallas_call(
        functools.partial(_ln_kernel, eps=eps),
        out_shape=jax.ShapeDtypeStruct((M, H), jnp.bfloat16),
        grid=(M // tm,),
        in_specs=[
            pl.BlockSpec((tm, H), lambda i: (i, 0)),
            pl.BlockSpec((1, H), lambda i: (0, 0)),
            pl.BlockSpec((1, H), lambda i: (0, 0)),
        ],
        out_specs=pl.BlockSpec((tm, H), lambda i: (i, 0)),
        compiler_params=pltpu.CompilerParams(
            dimension_semantics=("parallel",),
            vmem_limit_bytes=_VMEM_LIMIT),
    )(x, gamma.reshape(1, H).astype(jnp.float32),
      beta.reshape(1, H).astype(jnp.float32))


# --------------------------------------------------------------------------
# Self-attention.  Grid = (batch, head_group); the fused QKV GEMM output is
# already in head-group-major layout [Q_g | K_g | V_g] (weight columns were
# permuted once in prepare_params), so the BlockSpec slice per grid step is
# lane-aligned and small.  Each head's context is stored directly into its
# output slice (no concat, live state = one head).
# --------------------------------------------------------------------------
def _attn_kernel(qkv_ref, m_ref, o_ref, *, hg, dh, gw, scale):
    mask = m_ref[0]  # (1, S) additive mask, f32
    # TODO(synk): for S >~ 1K add a KV-block loop with online softmax instead
    # of materializing the full (S, S) score tile per head (v7x 64MiB VMEM).
    for j in range(hg):
        q = qkv_ref[0, :, j * dh:(j + 1) * dh]                    # (S, dh)
        k = qkv_ref[0, :, gw + j * dh:gw + (j + 1) * dh]          # (S, dh)
        v = qkv_ref[0, :, 2 * gw + j * dh:2 * gw + (j + 1) * dh]  # (S, dh)
        s = jax.lax.dot_general(q, k, (((1,), (1,)), ((), ())),
                                preferred_element_type=jnp.float32)
        s = s * scale + mask
        m = jnp.max(s, axis=-1, keepdims=True)
        e = jnp.exp(s - m)
        p = e * pl.reciprocal(jnp.sum(e, axis=-1, keepdims=True), approx=True)
        ctx = jnp.dot(p.astype(v.dtype), v, preferred_element_type=jnp.float32)
        o_ref[0, :, j * dh:(j + 1) * dh] = ctx.astype(o_ref.dtype)


def pallas_attention(qkv, mask_add, nh, dh, scale, hg):
    B, S, _ = qkv.shape
    H = nh * dh
    gw = hg * dh
    ng = nh // hg
    return pl.pallas_call(
        functools.partial(_attn_kernel, hg=hg, dh=dh, gw=gw, scale=scale),
        out_shape=jax.ShapeDtypeStruct((B, S, H), jnp.bfloat16),
        grid=(B, ng),
        in_specs=[
            pl.BlockSpec((1, S, 3 * gw), lambda b, g: (b, 0, g)),
            pl.BlockSpec((1, 1, S), lambda b, g: (b, 0, 0)),
        ],
        out_specs=pl.BlockSpec((1, S, gw), lambda b, g: (b, 0, g)),
        compiler_params=pltpu.CompilerParams(
            dimension_semantics=("parallel", "parallel"),
            vmem_limit_bytes=_VMEM_LIMIT),
    )(qkv, mask_add)


# --------------------------------------------------------------------------
# Parameter init (deterministic synthetic "pretrained" weights, f32 standard
# layout — used directly by the pure-JAX reference).
# --------------------------------------------------------------------------
def init_params(key, cfg):
    H, I, NL = cfg["hidden"], cfg["intermediate"], cfg["layers"]
    std = 0.02

    def nrm(k, shape):
        return jax.random.normal(k, shape, jnp.float32) * std

    keys = iter(jax.random.split(key, 8 + 8 * NL))
    p = {
        "word_emb": nrm(next(keys), (cfg["vocab"], H)),
        "pos_emb": nrm(next(keys), (cfg["max_pos"], H)),
        "type_emb": nrm(next(keys), (cfg["type_vocab"], H)),
        "emb_ln_g": jnp.ones((H,), jnp.float32),
        "emb_ln_b": jnp.zeros((H,), jnp.float32),
        "wp": nrm(next(keys), (H, H)),
        "bp": jnp.zeros((H,), jnp.float32),
        "wc": nrm(next(keys), (H, cfg["num_classes"])),
        "bc": jnp.zeros((cfg["num_classes"],), jnp.float32),
        "layers": [],
    }
    for _ in range(NL):
        lyr = {
            # fused QKV projection weight (H, 3H): [Wq | Wk | Wv]
            "w_qkv": nrm(next(keys), (H, 3 * H)),
            "b_qkv": jnp.zeros((3 * H,), jnp.float32),
            "wo": nrm(next(keys), (H, H)), "bo": jnp.zeros((H,), jnp.float32),
            "ln1_g": jnp.ones((H,), jnp.float32),
            "ln1_b": jnp.zeros((H,), jnp.float32),
            "w1": nrm(next(keys), (H, I)), "b1": jnp.zeros((I,), jnp.float32),
            "w2": nrm(next(keys), (I, H)), "b2": jnp.zeros((H,), jnp.float32),
            "ln2_g": jnp.ones((H,), jnp.float32),
            "ln2_b": jnp.zeros((H,), jnp.float32),
        }
        p["layers"].append(lyr)
    return p


# --------------------------------------------------------------------------
# One-time device-format conversion: bf16 weights + head-group-major QKV
# column permutation.  Done once, outside the forward pass.
# --------------------------------------------------------------------------
def prepare_params(params, cfg):
    H = cfg["hidden"]
    nh = cfg["heads"]
    dh = H // nh
    hg = _head_group(nh, dh)
    ng = nh // hg
    idx = []
    for g in range(ng):
        for part in range(3):                       # Q | K | V of the group
            base = part * H + g * hg * dh
            idx.extend(range(base, base + hg * dh))
    idx = np.asarray(idx, dtype=np.int32)

    def bf16(w):
        return jnp.asarray(w, jnp.bfloat16)

    out = {
        "word_emb": params["word_emb"],
        "pos_emb": params["pos_emb"],
        "type_emb": params["type_emb"],
        "emb_ln_g": params["emb_ln_g"], "emb_ln_b": params["emb_ln_b"],
        "wp": bf16(params["wp"]), "bp": params["bp"],
        "wc": params["wc"], "bc": params["bc"],   # tiny classifier stays f32/JAX
        "layers": [],
    }
    for lyr in params["layers"]:
        out["layers"].append({
            "w_qkv": bf16(lyr["w_qkv"][:, idx]),
            "b_qkv": lyr["b_qkv"][idx],
            "wo": bf16(lyr["wo"]), "bo": lyr["bo"],
            "ln1_g": lyr["ln1_g"], "ln1_b": lyr["ln1_b"],
            "w1": bf16(lyr["w1"]), "b1": lyr["b1"],
            "w2": bf16(lyr["w2"]), "b2": lyr["b2"],
            "ln2_g": lyr["ln2_g"], "ln2_b": lyr["ln2_b"],
        })
    return out


# --------------------------------------------------------------------------
# Forward pass (Pallas hot path, JAX glue for gathers / tiny classifier)
# --------------------------------------------------------------------------
def bert_for_classification(params, input_ids, attention_mask, token_type_ids, cfg):
    B, S = input_ids.shape
    H = cfg["hidden"]
    nh = cfg["heads"]
    dh = H // nh
    hg = _head_group(nh, dh)
    scale = 1.0 / float(np.sqrt(dh))
    M = B * S

    # Embeddings (gather is glue) + no-residual LayerNorm (Pallas, bf16 slab in).
    pos_ids = jnp.arange(S, dtype=jnp.int32)
    emb = (params["word_emb"][input_ids]
           + params["pos_emb"][pos_ids][None, :, :]
           + params["type_emb"][token_type_ids])
    h = pallas_layernorm(emb.astype(jnp.bfloat16).reshape(M, H),
                         params["emb_ln_g"], params["emb_ln_b"])

    mask_add = ((1.0 - attention_mask.astype(jnp.float32)) * -10000.0).reshape(B, 1, S)

    for lyr in params["layers"]:
        # Fused QKV projection: one lane-dense (M, 3H) GEMM (head-group layout).
        qkv = pallas_dense(h, lyr["w_qkv"], lyr["b_qkv"])
        ctx = pallas_attention(qkv.reshape(B, S, 3 * H), mask_add, nh, dh, scale, hg)
        ctx = ctx.reshape(M, H)
        # Attention output projection + residual + LayerNorm fused.
        h = pallas_dense_res_ln(ctx, lyr["wo"], lyr["bo"], h,
                                lyr["ln1_g"], lyr["ln1_b"])
        # FFN up + GELU + down + residual + LayerNorm fused.
        h = pallas_ffn(h, lyr["w1"], lyr["b1"], lyr["w2"], lyr["b2"], h,
                       lyr["ln2_g"], lyr["ln2_b"])

    # BERT pooler: tanh(W @ hidden[:, 0] + b) — lane-dense Pallas dense.
    cls = h.reshape(B, S, H)[:, 0, :]
    pooled = pallas_dense(cls, params["wp"], params["bp"], activation="tanh",
                          out_dtype=jnp.float32)
    # Dropout: eval-mode identity.
    # TODO(synk): classifier GEMM (N=num_classes << 128) kept in plain JAX per
    # perf review; pad N to 128 if a Pallas path is ever required.
    logits = jax.nn.softmax(pooled @ params["wc"] + params["bc"], axis=-1)
    return logits


# --------------------------------------------------------------------------
# Pure-JAX f32 reference (same math, standard layout) for a correctness check
# --------------------------------------------------------------------------
def reference_forward(params, input_ids, attention_mask, token_type_ids, cfg):
    B, S = input_ids.shape
    H, nh = cfg["hidden"], cfg["heads"]
    dh = H // nh
    scale = 1.0 / float(np.sqrt(dh))

    def ln(x, g, b, eps=1e-12):
        m = jnp.mean(x, -1, keepdims=True)
        v = jnp.mean(jnp.square(x - m), -1, keepdims=True)
        return (x - m) * jax.lax.rsqrt(v + eps) * g + b

    emb = (params["word_emb"][input_ids]
           + params["pos_emb"][jnp.arange(S)][None]
           + params["type_emb"][token_type_ids])
    h = ln(emb, params["emb_ln_g"], params["emb_ln_b"])
    mask_add = ((1.0 - attention_mask.astype(jnp.float32)) * -10000.0)[:, None, None, :]
    for lyr in params["layers"]:
        qkv = h @ lyr["w_qkv"] + lyr["b_qkv"]
        q, k, v = jnp.split(qkv, 3, axis=-1)
        q = q.reshape(B, S, nh, dh).transpose(0, 2, 1, 3)
        k = k.reshape(B, S, nh, dh).transpose(0, 2, 1, 3)
        v = v.reshape(B, S, nh, dh).transpose(0, 2, 1, 3)
        sc = jnp.einsum("bhqd,bhkd->bhqk", q, k) * scale + mask_add
        pr = jax.nn.softmax(sc, axis=-1)
        ctx = jnp.einsum("bhqk,bhkd->bhqd", pr, v).transpose(0, 2, 1, 3).reshape(B, S, H)
        h = ln(ctx @ lyr["wo"] + lyr["bo"] + h, lyr["ln1_g"], lyr["ln1_b"])
        ff = _gelu(h @ lyr["w1"] + lyr["b1"]) @ lyr["w2"] + lyr["b2"]
        h = ln(ff + h, lyr["ln2_g"], lyr["ln2_b"])
    pooled = jnp.tanh(h[:, 0, :] @ params["wp"] + params["bp"])
    return jax.nn.softmax(pooled @ params["wc"] + params["bc"], axis=-1)


# --------------------------------------------------------------------------
if __name__ == "__main__":
    cfg = dict(vocab=64, hidden=32, heads=2, intermediate=64, layers=2,
               max_pos=16, type_vocab=2, num_classes=2)
    B, S = 2, 8

    key = jax.random.PRNGKey(0)
    kp, kid, ktt = jax.random.split(key, 3)
    params = init_params(kp, cfg)
    dev_params = prepare_params(params, cfg)   # one-time bf16 cast + QKV permute

    input_ids = jax.random.randint(kid, (B, S), 0, cfg["vocab"], dtype=jnp.int32)
    token_type_ids = jax.random.randint(ktt, (B, S), 0, cfg["type_vocab"], dtype=jnp.int32)
    attention_mask = jnp.array(
        [[1, 1, 1, 1, 1, 1, 1, 1],
         [1, 1, 1, 1, 1, 0, 0, 0]], dtype=jnp.int32)

    fwd = jax.jit(functools.partial(bert_for_classification, cfg=cfg))
    logits = fwd(dev_params, input_ids, attention_mask, token_type_ids)
    logits = jax.block_until_ready(logits)

    ref = reference_forward(params, input_ids, attention_mask, token_type_ids, cfg)
    # bf16 MXU inputs (fp32 accumulation) vs f32 reference → loosened tolerance.
    np.testing.assert_allclose(np.asarray(logits), np.asarray(ref),
                               rtol=2e-2, atol=2e-2)
    assert logits.shape == (B, cfg["num_classes"])
    np.testing.assert_allclose(np.asarray(logits).sum(-1), np.ones(B), atol=1e-5)

    print("KERNEL_OK")
</pallas_src>

<mosaic_0001>
module attributes {stable_mosaic.version = 11 : i64} {
  func.func @_dense_kernel(%arg0: i32, %arg1: i32, %arg2: i32, %arg3: memref<16x32xbf16, #tpu.memory_space<vmem>>, %arg4: memref<32x96xbf16, #tpu.memory_space<vmem>>, %arg5: memref<1x96xf32, #tpu.memory_space<vmem>>, %arg6: memref<16x96xbf16, #tpu.memory_space<vmem>>, %arg7: memref<16x96xf32, #tpu.memory_space<vmem>>) attributes {dimension_semantics = [#tpu.dimension_semantics<parallel>, #tpu.dimension_semantics<parallel>, #tpu.dimension_semantics<arbitrary>], iteration_bounds = array<i64: 1, 1, 1>, scalar_prefetch = 0 : i64, scratch_operands = 1 : i64, tpu.core_type = #tpu.core_type<tc>, window_params = [{transform_indices = @transform_0, window_bounds = array<i64: 16, 32>}, {transform_indices = @transform_1, window_bounds = array<i64: 32, 96>}, {transform_indices = @transform_2, window_bounds = array<i64: 1, 96>}, {transform_indices = @transform_3, window_bounds = array<i64: 16, 96>}]} {
    %c0_i32 = arith.constant 0 : i32
    %0 = arith.cmpi eq, %arg2, %c0_i32 : i32
    %1 = arith.extui %0 : i1 to i32
    %c0_i32_0 = arith.constant 0 : i32
    %2 = arith.cmpi ne, %1, %c0_i32_0 : i32
    scf.if %2 {
      %cst_10 = arith.constant 0.000000e+00 : f32
      %12 = vector.broadcast %cst_10 : f32 to vector<16x96xf32>
      %c0_11 = arith.constant 0 : index
      %c0_12 = arith.constant 0 : index
      %13 = vector.load %arg7[%c0_11, %c0_12] : memref<16x96xf32, #tpu.memory_space<vmem>>, vector<16x96xf32>
      tpu.vector_store %arg7[%c0_11, %c0_12], %12 {strides = array<i32>} : memref<16x96xf32, #tpu.memory_space<vmem>>, vector<16x96xf32>,
    } else {
    }
    %c0 = arith.constant 0 : index
    %c0_1 = arith.constant 0 : index
    %3 = vector.load %arg7[%c0, %c0_1] : memref<16x96xf32, #tpu.memory_space<vmem>>, vector<16x96xf32>
    %c0_2 = arith.constant 0 : index
    %c0_3 = arith.constant 0 : index
    %4 = vector.load %arg3[%c0_2, %c0_3] : memref<16x32xbf16, #tpu.memory_space<vmem>>, vector<16x32xbf16>
    %c0_4 = arith.constant 0 : index
    %c0_5 = arith.constant 0 : index
    %5 = vector.load %arg4[%c0_4, %c0_5] : memref<32x96xbf16, #tpu.memory_space<vmem>>, vector<32x96xbf16>
    %cst = arith.constant dense<0.000000e+00> : vector<16x96xf32>
    %6 = tpu.matmul %4, %5, %cst {dimension_numbers = #tpu.dot_dimension_numbers<[1], [0], [0], [1], [0, 0, 1, 1], [], []>} : vector<16x32xbf16>, vector<32x96xbf16>, vector<16x96xf32> -> vector<16x96xf32>
    %7 = arith.addf %3, %6 : vector<16x96xf32>
    %c0_6 = arith.constant 0 : index
    %c0_7 = arith.constant 0 : index
    %8 = vector.load %arg7[%c0_6, %c0_7] : memref<16x96xf32, #tpu.memory_space<vmem>>, vector<16x96xf32>
    tpu.vector_store %arg7[%c0_6, %c0_7], %7 {strides = array<i32>} : memref<16x96xf32, #tpu.memory_space<vmem>>, vector<16x96xf32>,
    %c0_i32_8 = arith.constant 0 : i32
    %9 = arith.cmpi eq, %arg2, %c0_i32_8 : i32
    %10 = arith.extui %9 : i1 to i32
    %c0_i32_9 = arith.constant 0 : i32
    %11 = arith.cmpi ne, %10, %c0_i32_9 : i32
    scf.if %11 {
      %c0_10 = arith.constant 0 : index
      %c0_11 = arith.constant 0 : index
      %12 = vector.load %arg7[%c0_10, %c0_11] : memref<16x96xf32, #tpu.memory_space<vmem>>, vector<16x96xf32>
      %c0_12 = arith.constant 0 : index
      %c0_13 = arith.constant 0 : index
      %13 = vector.load %arg5[%c0_12, %c0_13] : memref<1x96xf32, #tpu.memory_space<vmem>>, vector<1x96xf32>
      %14 = vector.broadcast %13 : vector<1x96xf32> to vector<16x96xf32>
      %15 = arith.addf %12, %14 : vector<16x96xf32>
      %16 = arith.truncf %15 : vector<16x96xf32> to vector<16x96xbf16>
      %c0_14 = arith.constant 0 : index
      %c0_15 = arith.constant 0 : index
      %17 = vector.load %arg6[%c0_14, %c0_15] : memref<16x96xbf16, #tpu.memory_space<vmem>>, vector<16x96xbf16>
      tpu.vector_store %arg6[%c0_14, %c0_15], %16 {strides = array<i32>} : memref<16x96xbf16, #tpu.memory_space<vmem>>, vector<16x96xbf16>,
    } else {
    }
    return
  }
  func.func @transform_0(%arg0: i32, %arg1: i32, %arg2: i32) -> (i32, i32) {
    %c0_i32 = arith.constant 0 : i32
    return %arg0, %arg2 : i32, i32
  }
  func.func @transform_1(%arg0: i32, %arg1: i32, %arg2: i32) -> (i32, i32) {
    %c0_i32 = arith.constant 0 : i32
    return %arg2, %arg1 : i32, i32
  }
  func.func @transform_2(%arg0: i32, %arg1: i32, %arg2: i32) -> (i32, i32) {
    %c0_i32 = arith.constant 0 : i32
    %c0_i32_0 = arith.constant 0 : i32
    return %c0_i32, %arg1 : i32, i32
  }
  func.func @transform_3(%arg0: i32, %arg1: i32, %arg2: i32) -> (i32, i32) {
    %c0_i32 = arith.constant 0 : i32
    return %arg0, %arg1 : i32, i32
  }
}

module attributes {stable_mosaic.version = 11 : i64} {
  func.func @_ln_kernel(%arg0: i32, %arg1: memref<16x32xbf16, #tpu.memory_space<vmem>>, %arg2: memref<1x32xf32, #tpu.memory_space<vmem>>, %arg3: memref<1x32xf32, #tpu.memory_space<vmem>>, %arg4: memref<16x32xbf16, #tpu.memory_space<vmem>>) attributes {dimension_semantics = [#tpu.dimension_semantics<parallel>], iteration_bounds = array<i64: 1>, scalar_prefetch = 0 : i64, scratch_operands = 0 : i64, tpu.core_type = #tpu.core_type<tc>, window_params = [{transform_indices = @transform_0, window_bounds = array<i64: 16, 32>}, {pipeline_mode = #tpu.pipeline_mode<synchronous>, transform_indices = @transform_1, window_bounds = array<i64: 1, 32>}, {pipeline_mode = #tpu.pipeline_mode<synchronous>, transform_indices = @transform_2, window_bounds = array<i64: 1, 32>}, {transform_indices = @transform_3, window_bounds = array<i64: 16, 32>}]} {
    %c0 = arith.constant 0 : index
    %c0_0 = arith.constant 0 : index
    %0 = vector.load %arg1[%c0, %c0_0] : memref<16x32xbf16, #tpu.memory_space<vmem>>, vector<16x32xbf16>
    %1 = arith.extf %0 : vector<16x32xbf16> to vector<16x32xf32>
    %cst = arith.constant dense<0.000000e+00> : vector<16xf32>
    %2 = vector.multi_reduction <add>, %1, %cst [1] : vector<16x32xf32> to vector<16xf32>
    %3 = vector.shape_cast %2 : vector<16xf32> to vector<16x1xf32>
    %cst_1 = arith.constant 3.200000e+01 : f32
    %4 = vector.broadcast %cst_1 : f32 to vector<16x1xf32>
    %5 = arith.divf %3, %4 : vector<16x1xf32>
    %6 = vector.broadcast %5 : vector<16x1xf32> to vector<16x32xf32>
    %7 = arith.subf %1, %6 : vector<16x32xf32>
    %8 = arith.mulf %7, %7 : vector<16x32xf32>
    %cst_2 = arith.constant dense<0.000000e+00> : vector<16xf32>
    %9 = vector.multi_reduction <add>, %8, %cst_2 [1] : vector<16x32xf32> to vector<16xf32>
    %10 = vector.shape_cast %9 : vector<16xf32> to vector<16x1xf32>
    %cst_3 = arith.constant 3.200000e+01 : f32
    %11 = vector.broadcast %cst_3 : f32 to vector<16x1xf32>
    %12 = arith.divf %10, %11 : vector<16x1xf32>
    %13 = vector.broadcast %5 : vector<16x1xf32> to vector<16x32xf32>
    %14 = arith.subf %1, %13 : vector<16x32xf32>
    %cst_4 = arith.constant 9.99999996E-13 : f32
    %15 = vector.broadcast %cst_4 : f32 to vector<16x1xf32>
    %16 = arith.addf %12, %15 : vector<16x1xf32>
    %17 = math.rsqrt %16 : vector<16x1xf32>
    %18 = vector.broadcast %17 : vector<16x1xf32> to vector<16x32xf32>
    %19 = arith.mulf %14, %18 : vector<16x32xf32>
    %c0_5 = arith.constant 0 : index
    %c0_6 = arith.constant 0 : index
    %20 = vector.load %arg2[%c0_5, %c0_6] : memref<1x32xf32, #tpu.memory_space<vmem>>, vector<1x32xf32>
    %21 = vector.broadcast %20 : vector<1x32xf32> to vector<16x32xf32>
    %22 = arith.mulf %19, %21 : vector<16x32xf32>
    %c0_7 = arith.constant 0 : index
    %c0_8 = arith.constant 0 : index
    %23 = vector.load %arg3[%c0_7, %c0_8] : memref<1x32xf32, #tpu.memory_space<vmem>>, vector<1x32xf32>
    %24 = vector.broadcast %23 : vector<1x32xf32> to vector<16x32xf32>
    %25 = arith.addf %22, %24 : vector<16x32xf32>
    %26 = arith.truncf %25 : vector<16x32xf32> to vector<16x32xbf16>
    %c0_9 = arith.constant 0 : index
    %c0_10 = arith.constant 0 : index
    %27 = vector.load %arg4[%c0_9, %c0_10] : memref<16x32xbf16, #tpu.memory_space<vmem>>, vector<16x32xbf16>
    tpu.vector_store %arg4[%c0_9, %c0_10], %26 {strides = array<i32>} : memref<16x32xbf16, #tpu.memory_space<vmem>>, vector<16x32xbf16>,
    return
  }
  func.func @transform_0(%arg0: i32) -> (i32, i32) {
    %c0_i32 = arith.constant 0 : i32
    %c0_i32_0 = arith.constant 0 : i32
    return %arg0, %c0_i32 : i32, i32
  }
  func.func @transform_1(%arg0: i32) -> (i32, i32) {
    %c0_i32 = arith.constant 0 : i32
    %c0_i32_0 = arith.constant 0 : i32
    %c0_i32_1 = arith.constant 0 : i32
    return %c0_i32, %c0_i32_0 : i32, i32
  }
  func.func @transform_2(%arg0: i32) -> (i32, i32) {
    %c0_i32 = arith.constant 0 : i32
    %c0_i32_0 = arith.constant 0 : i32
    %c0_i32_1 = arith.constant 0 : i32
    return %c0_i32, %c0_i32_0 : i32, i32
  }
  func.func @transform_3(%arg0: i32) -> (i32, i32) {
    %c0_i32 = arith.constant 0 : i32
    %c0_i32_0 = arith.constant 0 : i32
    return %arg0, %c0_i32 : i32, i32
  }
}

module attributes {stable_mosaic.version = 11 : i64} {
  func.func @_attn_kernel(%arg0: i32, %arg1: i32, %arg2: memref<1x8x96xbf16, #tpu.memory_space<vmem>>, %arg3: memref<1x1x8xf32, #tpu.memory_space<vmem>>, %arg4: memref<1x8x32xbf16, #tpu.memory_space<vmem>>) attributes {dimension_semantics = [#tpu.dimension_semantics<parallel>, #tpu.dimension_semantics<parallel>], iteration_bounds = array<i64: 2, 1>, scalar_prefetch = 0 : i64, scratch_operands = 0 : i64, tpu.core_type = #tpu.core_type<tc>, window_params = [{transform_indices = @transform_0, window_bounds = array<i64: 1, 8, 96>}, {transform_indices = @transform_1, window_bounds = array<i64: 1, 1, 8>}, {transform_indices = @transform_2, window_bounds = array<i64: 1, 8, 32>}]} {
    %c0 = arith.constant 0 : index
    %c0_0 = arith.constant 0 : index
    %c0_1 = arith.constant 0 : index
    %0 = vector.load %arg3[%c0, %c0_0, %c0_1] : memref<1x1x8xf32, #tpu.memory_space<vmem>>, vector<1x1x8xf32>
    %1 = vector.shape_cast %0 : vector<1x1x8xf32> to vector<1x8xf32>
    %c0_2 = arith.constant 0 : index
    %c0_3 = arith.constant 0 : index
    %c0_4 = arith.constant 0 : index
    %2 = vector.load %arg2[%c0_2, %c0_3, %c0_4] : memref<1x8x96xbf16, #tpu.memory_space<vmem>>, vector<1x8x16xbf16>
    %3 = vector.shape_cast %2 : vector<1x8x16xbf16> to vector<8x16xbf16>
    %c0_5 = arith.constant 0 : index
    %c0_6 = arith.constant 0 : index
    %c32 = arith.constant 32 : index
    %4 = vector.load %arg2[%c0_5, %c0_6, %c32] : memref<1x8x96xbf16, #tpu.memory_space<vmem>>, vector<1x8x16xbf16>
    %5 = vector.shape_cast %4 : vector<1x8x16xbf16> to vector<8x16xbf16>
    %c0_7 = arith.constant 0 : index
    %c0_8 = arith.constant 0 : index
    %c64 = arith.constant 64 : index
    %6 = vector.load %arg2[%c0_7, %c0_8, %c64] : memref<1x8x96xbf16, #tpu.memory_space<vmem>>, vector<1x8x16xbf16>
    %7 = vector.shape_cast %6 : vector<1x8x16xbf16> to vector<8x16xbf16>
    %cst = arith.constant dense<0.000000e+00> : vector<8x8xf32>
    %8 = tpu.matmul %3, %5, %cst {dimension_numbers = #tpu.dot_dimension_numbers<[1], [1], [0], [0], [0, 0, 1, 0], [], []>} : vector<8x16xbf16>, vector<8x16xbf16>, vector<8x8xf32> -> vector<8x8xf32>
    %cst_9 = arith.constant 2.500000e-01 : f32
    %9 = vector.broadcast %cst_9 : f32 to vector<8x8xf32>
    %10 = arith.mulf %8, %9 : vector<8x8xf32>
    %11 = vector.broadcast %1 : vector<1x8xf32> to vector<8x8xf32>
    %12 = arith.addf %10, %11 : vector<8x8xf32>
    %cst_10 = arith.constant dense<0xFF800000> : vector<8xf32>
    %13 = vector.multi_reduction <maximumf>, %12, %cst_10 [1] : vector<8x8xf32> to vector<8xf32>
    %14 = vector.shape_cast %13 : vector<8xf32> to vector<8x1xf32>
    %15 = vector.broadcast %14 : vector<8x1xf32> to vector<8x8xf32>
    %16 = arith.subf %12, %15 : vector<8x8xf32>
    %17 = math.exp %16 : vector<8x8xf32>
    %cst_11 = arith.constant dense<0.000000e+00> : vector<8xf32>
    %18 = vector.multi_reduction <add>, %17, %cst_11 [1] : vector<8x8xf32> to vector<8xf32>
    %19 = vector.shape_cast %18 : vector<8xf32> to vector<8x1xf32>
    %20 = tpu.reciprocal %19 {approx = true} : vector<8x1xf32> -> vector<8x1xf32>
    %21 = vector.broadcast %20 : vector<8x1xf32> to vector<8x8xf32>
    %22 = arith.mulf %17, %21 : vector<8x8xf32>
    %23 = arith.truncf %22 : vector<8x8xf32> to vector<8x8xbf16>
    %cst_12 = arith.constant dense<0.000000e+00> : vector<8x16xf32>
    %24 = tpu.matmul %23, %7, %cst_12 {dimension_numbers = #tpu.dot_dimension_numbers<[1], [0], [0], [1], [0, 0, 1, 1], [], []>} : vector<8x8xbf16>, vector<8x16xbf16>, vector<8x16xf32> -> vector<8x16xf32>
    %25 = arith.truncf %24 : vector<8x16xf32> to vector<8x16xbf16>
    %c0_13 = arith.constant 0 : index
    %c0_14 = arith.constant 0 : index
    %c0_15 = arith.constant 0 : index
    %26 = vector.load %arg4[%c0_13, %c0_14, %c0_15] : memref<1x8x32xbf16, #tpu.memory_space<vmem>>, vector<1x8x16xbf16>
    %27 = vector.shape_cast %26 : vector<1x8x16xbf16> to vector<8x16xbf16>
    %28 = vector.shape_cast %25 : vector<8x16xbf16> to vector<1x8x16xbf16>
    tpu.vector_store %arg4[%c0_13, %c0_14, %c0_15], %28 {strides = array<i32>} : memref<1x8x32xbf16, #tpu.memory_space<vmem>>, vector<1x8x16xbf16>,
    %c0_16 = arith.constant 0 : index
    %c0_17 = arith.constant 0 : index
    %c16 = arith.constant 16 : index
    %29 = vector.load %arg2[%c0_16, %c0_17, %c16] : memref<1x8x96xbf16, #tpu.memory_space<vmem>>, vector<1x8x16xbf16>
    %30 = vector.shape_cast %29 : vector<1x8x16xbf16> to vector<8x16xbf16>
    %c0_18 = arith.constant 0 : index
    %c0_19 = arith.constant 0 : index
    %c48 = arith.constant 48 : index
    %31 = vector.load %arg2[%c0_18, %c0_19, %c48] : memref<1x8x96xbf16, #tpu.memory_space<vmem>>, vector<1x8x16xbf16>
    %32 = vector.shape_cast %31 : vector<1x8x16xbf16> to vector<8x16xbf16>
    %c0_20 = arith.constant 0 : index
    %c0_21 = arith.constant 0 : index
    %c80 = arith.constant 80 : index
    %33 = vector.load %arg2[%c0_20, %c0_21, %c80] : memref<1x8x96xbf16, #tpu.memory_space<vmem>>, vector<1x8x16xbf16>
    %34 = vector.shape_cast %33 : vector<1x8x16xbf16> to vector<8x16xbf16>
    %cst_22 = arith.constant dense<0.000000e+00> : vector<8x8xf32>
    %35 = tpu.matmul %30, %32, %cst_22 {dimension_numbers = #tpu.dot_dimension_numbers<[1], [1], [0], [0], [0, 0, 1, 0], [], []>} : vector<8x16xbf16>, vector<8x16xbf16>, vector<8x8xf32> -> vector<8x8xf32>
    %cst_23 = arith.constant 2.500000e-01 : f32
    %36 = vector.broadcast %cst_23 : f32 to vector<8x8xf32>
    %37 = arith.mulf %35, %36 : vector<8x8xf32>
    %38 = vector.broadcast %1 : vector<1x8xf32> to vector<8x8xf32>
    %39 = arith.addf %37, %38 : vector<8x8xf32>
    %cst_24 = arith.constant dense<0xFF800000> : vector<8xf32>
    %40 = vector.multi_reduction <maximumf>, %39, %cst_24 [1] : vector<8x8xf32> to vector<8xf32>
    %41 = vector.shape_cast %40 : vector<8xf32> to vector<8x1xf32>
    %42 = vector.broadcast %41 : vector<8x1xf32> to vector<8x8xf32>
    %43 = arith.subf %39, %42 : vector<8x8xf32>
    %44 = math.exp %43 : vector<8x8xf32>
    %cst_25 = arith.constant dense<0.000000e+00> : vector<8xf32>
    %45 = vector.multi_reduction <add>, %44, %cst_25 [1] : vector<8x8xf32> to vector<8xf32>
    %46 = vector.shape_cast %45 : vector<8xf32> to vector<8x1xf32>
    %47 = tpu.reciprocal %46 {approx = true} : vector<8x1xf32> -> vector<8x1xf32>
    %48 = vector.broadcast %47 : vector<8x1xf32> to vector<8x8xf32>
    %49 = arith.mulf %44, %48 : vector<8x8xf32>
    %50 = arith.truncf %49 : vector<8x8xf32> to vector<8x8xbf16>
    %cst_26 = arith.constant dense<0.000000e+00> : vector<8x16xf32>
    %51 = tpu.matmul %50, %34, %cst_26 {dimension_numbers = #tpu.dot_dimension_numbers<[1], [0], [0], [1], [0, 0, 1, 1], [], []>} : vector<8x8xbf16>, vector<8x16xbf16>, vector<8x16xf32> -> vector<8x16xf32>
    %52 = arith.truncf %51 : vector<8x16xf32> to vector<8x16xbf16>
    %c0_27 = arith.constant 0 : index
    %c0_28 = arith.constant 0 : index
    %c16_29 = arith.constant 16 : index
    %53 = vector.load %arg4[%c0_27, %c0_28, %c16_29] : memref<1x8x32xbf16, #tpu.memory_space<vmem>>, vector<1x8x16xbf16>
    %54 = vector.shape_cast %53 : vector<1x8x16xbf16> to vector<8x16xbf16>
    %55 = vector.shape_cast %52 : vector<8x16xbf16> to vector<1x8x16xbf16>
    tpu.vector_store %arg4[%c0_27, %c0_28, %c16_29], %55 {strides = array<i32>} : memref<1x8x32xbf16, #tpu.memory_space<vmem>>, vector<1x8x16xbf16>,
    return
  }
  func.func @transform_0(%arg0: i32, %arg1: i32) -> (i32, i32, i32) {
    %c0_i32 = arith.constant 0 : i32
    %c0_i32_0 = arith.constant 0 : i32
    return %arg0, %c0_i32, %arg1 : i32, i32, i32
  }
  func.func @transform_1(%arg0: i32, %arg1: i32) -> (i32, i32, i32) {
    %c0_i32 = arith.constant 0 : i32
    %c0_i32_0 = arith.constant 0 : i32
    %c0_i32_1 = arith.constant 0 : i32
    return %arg0, %c0_i32, %c0_i32_0 : i32, i32, i32
  }
  func.func @transform_2(%arg0: i32, %arg1: i32) -> (i32, i32, i32) {
    %c0_i32 = arith.constant 0 : i32
    %c0_i32_0 = arith.constant 0 : i32
    return %arg0, %c0_i32, %arg1 : i32, i32, i32
  }
}

module attributes {stable_mosaic.version = 11 : i64} {
  func.func @_dense_res_ln_kernel(%arg0: i32, %arg1: i32, %arg2: memref<16x32xbf16, #tpu.memory_space<vmem>>, %arg3: memref<32x32xbf16, #tpu.memory_space<vmem>>, %arg4: memref<1x32xf32, #tpu.memory_space<vmem>>, %arg5: memref<16x32xbf16, #tpu.memory_space<vmem>>, %arg6: memref<1x32xf32, #tpu.memory_space<vmem>>, %arg7: memref<1x32xf32, #tpu.memory_space<vmem>>, %arg8: memref<16x32xbf16, #tpu.memory_space<vmem>>, %arg9: memref<16x32xf32, #tpu.memory_space<vmem>>) attributes {dimension_semantics = [#tpu.dimension_semantics<parallel>, #tpu.dimension_semantics<arbitrary>], iteration_bounds = array<i64: 1, 1>, scalar_prefetch = 0 : i64, scratch_operands = 1 : i64, tpu.core_type = #tpu.core_type<tc>, window_params = [{transform_indices = @transform_0, window_bounds = array<i64: 16, 32>}, {transform_indices = @transform_1, window_bounds = array<i64: 32, 32>}, {pipeline_mode = #tpu.pipeline_mode<synchronous>, transform_indices = @transform_2, window_bounds = array<i64: 1, 32>}, {transform_indices = @transform_3, window_bounds = array<i64: 16, 32>}, {pipeline_mode = #tpu.pipeline_mode<synchronous>, transform_indices = @transform_4, window_bounds = array<i64: 1, 32>}, {pipeline_mode = #tpu.pipeline_mode<synchronous>, transform_indices = @transform_5, window_bounds = array<i64: 1, 32>}, {transform_indices = @transform_6, window_bounds = array<i64: 16, 32>}]} {
    %c0_i32 = arith.constant 0 : i32
    %0 = arith.cmpi eq, %arg1, %c0_i32 : i32
    %1 = arith.extui %0 : i1 to i32
    %c0_i32_0 = arith.constant 0 : i32
    %2 = arith.cmpi ne, %1, %c0_i32_0 : i32
    scf.if %2 {
      %cst_10 = arith.constant 0.000000e+00 : f32
      %12 = vector.broadcast %cst_10 : f32 to vector<16x32xf32>
      %c0_11 = arith.constant 0 : index
      %c0_12 = arith.constant 0 : index
      %13 = vector.load %arg9[%c0_11, %c0_12] : memref<16x32xf32, #tpu.memory_space<vmem>>, vector<16x32xf32>
      tpu.vector_store %arg9[%c0_11, %c0_12], %12 {strides = array<i32>} : memref<16x32xf32, #tpu.memory_space<vmem>>, vector<16x32xf32>,
    } else {
    }
    %c0 = arith.constant 0 : index
    %c0_1 = arith.constant 0 : index
    %3 = vector.load %arg9[%c0, %c0_1] : memref<16x32xf32, #tpu.memory_space<vmem>>, vector<16x32xf32>
    %c0_2 = arith.constant 0 : index
    %c0_3 = arith.constant 0 : index
    %4 = vector.load %arg2[%c0_2, %c0_3] : memref<16x32xbf16, #tpu.memory_space<vmem>>, vector<16x32xbf16>
    %c0_4 = arith.constant 0 : index
    %c0_5 = arith.constant 0 : index
    %5 = vector.load %arg3[%c0_4, %c0_5] : memref<32x32xbf16, #tpu.memory_space<vmem>>, vector<32x32xbf16>
    %cst = arith.constant dense<0.000000e+00> : vector<16x32xf32>
    %6 = tpu.matmul %4, %5, %cst {dimension_numbers = #tpu.dot_dimension_numbers<[1], [0], [0], [1], [0, 0, 1, 1], [], []>} : vector<16x32xbf16>, vector<32x32xbf16>, vector<16x32xf32> -> vector<16x32xf32>
    %7 = arith.addf %3, %6 : vector<16x32xf32>
    %c0_6 = arith.constant 0 : index
    %c0_7 = arith.constant 0 : index
    %8 = vector.load %arg9[%c0_6, %c0_7] : memref<16x32xf32, #tpu.memory_space<vmem>>, vector<16x32xf32>
    tpu.vector_store %arg9[%c0_6, %c0_7], %7 {strides = array<i32>} : memref<16x32xf32, #tpu.memory_space<vmem>>, vector<16x32xf32>,
    %c0_i32_8 = arith.constant 0 : i32
    %9 = arith.cmpi eq, %arg1, %c0_i32_8 : i32
    %10 = arith.extui %9 : i1 to i32
    %c0_i32_9 = arith.constant 0 : i32
    %11 = arith.cmpi ne, %10, %c0_i32_9 : i32
    scf.if %11 {
      %c0_10 = arith.constant 0 : index
      %c0_11 = arith.constant 0 : index
      %12 = vector.load %arg9[%c0_10, %c0_11] : memref<16x32xf32, #tpu.memory_space<vmem>>, vector<16x32xf32>
      %c0_12 = arith.constant 0 : index
      %c0_13 = arith.constant 0 : index
      %13 = vector.load %arg4[%c0_12, %c0_13] : memref<1x32xf32, #tpu.memory_space<vmem>>, vector<1x32xf32>
      %14 = vector.broadcast %13 : vector<1x32xf32> to vector<16x32xf32>
      %15 = arith.addf %12, %14 : vector<16x32xf32>
      %c0_14 = arith.constant 0 : index
      %c0_15 = arith.constant 0 : index
      %16 = vector.load %arg5[%c0_14, %c0_15] : memref<16x32xbf16, #tpu.memory_space<vmem>>, vector<16x32xbf16>
      %17 = arith.extf %16 : vector<16x32xbf16> to vector<16x32xf32>
      %18 = arith.addf %15, %17 : vector<16x32xf32>
      %cst_16 = arith.constant dense<0.000000e+00> : vector<16xf32>
      %19 = vector.multi_reduction <add>, %18, %cst_16 [1] : vector<16x32xf32> to vector<16xf32>
      %20 = vector.shape_cast %19 : vector<16xf32> to vector<16x1xf32>
      %cst_17 = arith.constant 3.200000e+01 : f32
      %21 = vector.broadcast %cst_17 : f32 to vector<16x1xf32>
      %22 = arith.divf %20, %21 : vector<16x1xf32>
      %23 = vector.broadcast %22 : vector<16x1xf32> to vector<16x32xf32>
      %24 = arith.subf %18, %23 : vector<16x32xf32>
      %25 = arith.mulf %24, %24 : vector<16x32xf32>
      %cst_18 = arith.constant dense<0.000000e+00> : vector<16xf32>
      %26 = vector.multi_reduction <add>, %25, %cst_18 [1] : vector<16x32xf32> to vector<16xf32>
      %27 = vector.shape_cast %26 : vector<16xf32> to vector<16x1xf32>
      %cst_19 = arith.constant 3.200000e+01 : f32
      %28 = vector.broadcast %cst_19 : f32 to vector<16x1xf32>
      %29 = arith.divf %27, %28 : vector<16x1xf32>
      %30 = vector.broadcast %22 : vector<16x1xf32> to vector<16x32xf32>
      %31 = arith.subf %18, %30 : vector<16x32xf32>
      %cst_20 = arith.constant 9.99999996E-13 : f32
      %32 = vector.broadcast %cst_20 : f32 to vector<16x1xf32>
      %33 = arith.addf %29, %32 : vector<16x1xf32>
      %34 = math.rsqrt %33 : vector<16x1xf32>
      %35 = vector.broadcast %34 : vector<16x1xf32> to vector<16x32xf32>
      %36 = arith.mulf %31, %35 : vector<16x32xf32>
      %c0_21 = arith.constant 0 : index
      %c0_22 = arith.constant 0 : index
      %37 = vector.load %arg6[%c0_21, %c0_22] : memref<1x32xf32, #tpu.memory_space<vmem>>, vector<1x32xf32>
      %38 = vector.broadcast %37 : vector<1x32xf32> to vector<16x32xf32>
      %39 = arith.mulf %36, %38 : vector<16x32xf32>
      %c0_23 = arith.constant 0 : index
      %c0_24 = arith.constant 0 : index
      %40 = vector.load %arg7[%c0_23, %c0_24] : memref<1x32xf32, #tpu.memory_space<vmem>>, vector<1x32xf32>
      %41 = vector.broadcast %40 : vector<1x32xf32> to vector<16x32xf32>
      %42 = arith.addf %39, %41 : vector<16x32xf32>
      %43 = arith.truncf %42 : vector<16x32xf32> to vector<16x32xbf16>
      %c0_25 = arith.constant 0 : index
      %c0_26 = arith.constant 0 : index
      %44 = vector.load %arg8[%c0_25, %c0_26] : memref<16x32xbf16, #tpu.memory_space<vmem>>, vector<16x32xbf16>
      tpu.vector_store %arg8[%c0_25, %c0_26], %43 {strides = array<i32>} : memref<16x32xbf16, #tpu.memory_space<vmem>>, vector<16x32xbf16>,
    } else {
    }
    return
  }
  func.func @transform_0(%arg0: i32, %arg1: i32) -> (i32, i32) {
    %c0_i32 = arith.constant 0 : i32
    return %arg0, %arg1 : i32, i32
  }
  func.func @transform_1(%arg0: i32, %arg1: i32) -> (i32, i32) {
    %c0_i32 = arith.constant 0 : i32
    %c0_i32_0 = arith.constant 0 : i32
    return %arg1, %c0_i32 : i32, i32
  }
  func.func @transform_2(%arg0: i32, %arg1: i32) -> (i32, i32) {
    %c0_i32 = arith.constant 0 : i32
    %c0_i32_0 = arith.constant 0 : i32
    %c0_i32_1 = arith.constant 0 : i32
    return %c0_i32, %c0_i32_0 : i32, i32
  }
  func.func @transform_3(%arg0: i32, %arg1: i32) -> (i32, i32) {
    %c0_i32 = arith.constant 0 : i32
    %c0_i32_0 = arith.constant 0 : i32
    return %arg0, %c0_i32 : i32, i32
  }
  func.func @transform_4(%arg0: i32, %arg1: i32) -> (i32, i32) {
    %c0_i32 = arith.constant 0 : i32
    %c0_i32_0 = arith.constant 0 : i32
    %c0_i32_1 = arith.constant 0 : i32
    return %c0_i32, %c0_i32_0 : i32, i32
  }
  func.func @transform_5(%arg0: i32, %arg1: i32) -> (i32, i32) {
    %c0_i32 = arith.constant 0 : i32
    %c0_i32_0 = arith.constant 0 : i32
    %c0_i32_1 = arith.constant 0 : i32
    return %c0_i32, %c0_i32_0 : i32, i32
  }
  func.func @transform_6(%arg0: i32, %arg1: i32) -> (i32, i32) {
    %c0_i32 = arith.constant 0 : i32
    %c0_i32_0 = arith.constant 0 : i32
    return %arg0, %c0_i32 : i32, i32
  }
}

module attributes {stable_mosaic.version = 11 : i64} {
  func.func @_ffn_kernel(%arg0: i32, %arg1: i32, %arg2: memref<16x32xbf16, #tpu.memory_space<vmem>>, %arg3: memref<32x64xbf16, #tpu.memory_space<vmem>>, %arg4: memref<1x64xf32, #tpu.memory_space<vmem>>, %arg5: memref<64x32xbf16, #tpu.memory_space<vmem>>, %arg6: memref<1x32xf32, #tpu.memory_space<vmem>>, %arg7: memref<16x32xbf16, #tpu.memory_space<vmem>>, %arg8: memref<1x32xf32, #tpu.memory_space<vmem>>, %arg9: memref<1x32xf32, #tpu.memory_space<vmem>>, %arg10: memref<16x32xbf16, #tpu.memory_space<vmem>>, %arg11: memref<16x32xf32, #tpu.memory_space<vmem>>) attributes {dimension_semantics = [#tpu.dimension_semantics<parallel>, #tpu.dimension_semantics<arbitrary>], iteration_bounds = array<i64: 1, 1>, scalar_prefetch = 0 : i64, scratch_operands = 1 : i64, tpu.core_type = #tpu.core_type<tc>, window_params = [{transform_indices = @transform_0, window_bounds = array<i64: 16, 32>}, {transform_indices = @transform_1, window_bounds = array<i64: 32, 64>}, {transform_indices = @transform_2, window_bounds = array<i64: 1, 64>}, {transform_indices = @transform_3, window_bounds = array<i64: 64, 32>}, {pipeline_mode = #tpu.pipeline_mode<synchronous>, transform_indices = @transform_4, window_bounds = array<i64: 1, 32>}, {transform_indices = @transform_5, window_bounds = array<i64: 16, 32>}, {pipeline_mode = #tpu.pipeline_mode<synchronous>, transform_indices = @transform_6, window_bounds = array<i64: 1, 32>}, {pipeline_mode = #tpu.pipeline_mode<synchronous>, transform_indices = @transform_7, window_bounds = array<i64: 1, 32>}, {transform_indices = @transform_8, window_bounds = array<i64: 16, 32>}]} {
    %c0_i32 = arith.constant 0 : i32
    %0 = arith.cmpi eq, %arg1, %c0_i32 : i32
    %1 = arith.extui %0 : i1 to i32
    %c0_i32_0 = arith.constant 0 : i32
    %2 = arith.cmpi ne, %1, %c0_i32_0 : i32
    scf.if %2 {
      %cst_19 = arith.constant 0.000000e+00 : f32
      %31 = vector.broadcast %cst_19 : f32 to vector<16x32xf32>
      %c0_20 = arith.constant 0 : index
      %c0_21 = arith.constant 0 : index
      %32 = vector.load %arg11[%c0_20, %c0_21] : memref<16x32xf32, #tpu.memory_space<vmem>>, vector<16x32xf32>
      tpu.vector_store %arg11[%c0_20, %c0_21], %31 {strides = array<i32>} : memref<16x32xf32, #tpu.memory_space<vmem>>, vector<16x32xf32>,
    } else {
    }
    %c0 = arith.constant 0 : index
    %c0_1 = arith.constant 0 : index
    %3 = vector.load %arg2[%c0, %c0_1] : memref<16x32xbf16, #tpu.memory_space<vmem>>, vector<16x32xbf16>
    %c0_2 = arith.constant 0 : index
    %c0_3 = arith.constant 0 : index
    %4 = vector.load %arg3[%c0_2, %c0_3] : memref<32x64xbf16, #tpu.memory_space<vmem>>, vector<32x64xbf16>
    %cst = arith.constant dense<0.000000e+00> : vector<16x64xf32>
    %5 = tpu.matmul %3, %4, %cst {dimension_numbers = #tpu.dot_dimension_numbers<[1], [0], [0], [1], [0, 0, 1, 1], [], []>} : vector<16x32xbf16>, vector<32x64xbf16>, vector<16x64xf32> -> vector<16x64xf32>
    %c0_4 = arith.constant 0 : index
    %c0_5 = arith.constant 0 : index
    %6 = vector.load %arg4[%c0_4, %c0_5] : memref<1x64xf32, #tpu.memory_space<vmem>>, vector<1x64xf32>
    %7 = vector.broadcast %6 : vector<1x64xf32> to vector<16x64xf32>
    %8 = arith.addf %5, %7 : vector<16x64xf32>
    %cst_6 = arith.constant 5.000000e-01 : f32
    %9 = vector.broadcast %cst_6 : f32 to vector<16x64xf32>
    %10 = arith.mulf %9, %8 : vector<16x64xf32>
    %cst_7 = arith.constant 4.471500e-02 : f32
    %11 = vector.broadcast %cst_7 : f32 to vector<16x64xf32>
    %12 = arith.mulf %11, %8 : vector<16x64xf32>
    %13 = arith.mulf %12, %8 : vector<16x64xf32>
    %14 = arith.mulf %13, %8 : vector<16x64xf32>
    %15 = arith.addf %8, %14 : vector<16x64xf32>
    %cst_8 = arith.constant 0.797884583 : f32
    %16 = vector.broadcast %cst_8 : f32 to vector<16x64xf32>
    %17 = arith.mulf %16, %15 : vector<16x64xf32>
    %18 = math.tanh %17 : vector<16x64xf32>
    %cst_9 = arith.constant 1.000000e+00 : f32
    %19 = vector.broadcast %cst_9 : f32 to vector<16x64xf32>
    %20 = arith.addf %19, %18 : vector<16x64xf32>
    %21 = arith.mulf %10, %20 : vector<16x64xf32>
    %c0_10 = arith.constant 0 : index
    %c0_11 = arith.constant 0 : index
    %22 = vector.load %arg11[%c0_10, %c0_11] : memref<16x32xf32, #tpu.memory_space<vmem>>, vector<16x32xf32>
    %23 = arith.truncf %21 : vector<16x64xf32> to vector<16x64xbf16>
    %c0_12 = arith.constant 0 : index
    %c0_13 = arith.constant 0 : index
    %24 = vector.load %arg5[%c0_12, %c0_13] : memref<64x32xbf16, #tpu.memory_space<vmem>>, vector<64x32xbf16>
    %cst_14 = arith.constant dense<0.000000e+00> : vector<16x32xf32>
    %25 = tpu.matmul %23, %24, %cst_14 {dimension_numbers = #tpu.dot_dimension_numbers<[1], [0], [0], [1], [0, 0, 1, 1], [], []>} : vector<16x64xbf16>, vector<64x32xbf16>, vector<16x32xf32> -> vector<16x32xf32>
    %26 = arith.addf %22, %25 : vector<16x32xf32>
    %c0_15 = arith.constant 0 : index
    %c0_16 = arith.constant 0 : index
    %27 = vector.load %arg11[%c0_15, %c0_16] : memref<16x32xf32, #tpu.memory_space<vmem>>, vector<16x32xf32>
    tpu.vector_store %arg11[%c0_15, %c0_16], %26 {strides = array<i32>} : memref<16x32xf32, #tpu.memory_space<vmem>>, vector<16x32xf32>,
    %c0_i32_17 = arith.constant 0 : i32
    %28 = arith.cmpi eq, %arg1, %c0_i32_17 : i32
    %29 = arith.extui %28 : i1 to i32
    %c0_i32_18 = arith.constant 0 : i32
    %30 = arith.cmpi ne, %29, %c0_i32_18 : i32
    scf.if %30 {
      %c0_19 = arith.constant 0 : index
      %c0_20 = arith.constant 0 : index
      %31 = vector.load %arg11[%c0_19, %c0_20] : memref<16x32xf32, #tpu.memory_space<vmem>>, vector<16x32xf32>
      %c0_21 = arith.constant 0 : index
      %c0_22 = arith.constant 0 : index
      %32 = vector.load %arg6[%c0_21, %c0_22] : memref<1x32xf32, #tpu.memory_space<vmem>>, vector<1x32xf32>
      %33 = vector.broadcast %32 : vector<1x32xf32> to vector<16x32xf32>
      %34 = arith.addf %31, %33 : vector<16x32xf32>
      %c0_23 = arith.constant 0 : index
      %c0_24 = arith.constant 0 : index
      %35 = vector.load %arg7[%c0_23, %c0_24] : memref<16x32xbf16, #tpu.memory_space<vmem>>, vector<16x32xbf16>
      %36 = arith.extf %35 : vector<16x32xbf16> to vector<16x32xf32>
      %37 = arith.addf %34, %36 : vector<16x32xf32>
      %cst_25 = arith.constant dense<0.000000e+00> : vector<16xf32>
      %38 = vector.multi_reduction <add>, %37, %cst_25 [1] : vector<16x32xf32> to vector<16xf32>
      %39 = vector.shape_cast %38 : vector<16xf32> to vector<16x1xf32>
      %cst_26 = arith.constant 3.200000e+01 : f32
      %40 = vector.broadcast %cst_26 : f32 to vector<16x1xf32>
      %41 = arith.divf %39, %40 : vector<16x1xf32>
      %42 = vector.broadcast %41 : vector<16x1xf32> to vector<16x32xf32>
      %43 = arith.subf %37, %42 : vector<16x32xf32>
      %44 = arith.mulf %43, %43 : vector<16x32xf32>
      %cst_27 = arith.constant dense<0.000000e+00> : vector<16xf32>
      %45 = vector.multi_reduction <add>, %44, %cst_27 [1] : vector<16x32xf32> to vector<16xf32>
      %46 = vector.shape_cast %45 : vector<16xf32> to vector<16x1xf32>
      %cst_28 = arith.constant 3.200000e+01 : f32
      %47 = vector.broadcast %cst_28 : f32 to vector<16x1xf32>
      %48 = arith.divf %46, %47 : vector<16x1xf32>
      %49 = vector.broadcast %41 : vector<16x1xf32> to vector<16x32xf32>
      %50 = arith.subf %37, %49 : vector<16x32xf32>
      %cst_29 = arith.constant 9.99999996E-13 : f32
      %51 = vector.broadcast %cst_29 : f32 to vector<16x1xf32>
      %52 = arith.addf %48, %51 : vector<16x1xf32>
      %53 = math.rsqrt %52 : vector<16x1xf32>
      %54 = vector.broadcast %53 : vector<16x1xf32> to vector<16x32xf32>
      %55 = arith.mulf %50, %54 : vector<16x32xf32>
      %c0_30 = arith.constant 0 : index
      %c0_31 = arith.constant 0 : index
      %56 = vector.load %arg8[%c0_30, %c0_31] : memref<1x32xf32, #tpu.memory_space<vmem>>, vector<1x32xf32>
      %57 = vector.broadcast %56 : vector<1x32xf32> to vector<16x32xf32>
      %58 = arith.mulf %55, %57 : vector<16x32xf32>
      %c0_32 = arith.constant 0 : index
      %c0_33 = arith.constant 0 : index
      %59 = vector.load %arg9[%c0_32, %c0_33] : memref<1x32xf32, #tpu.memory_space<vmem>>, vector<1x32xf32>
      %60 = vector.broadcast %59 : vector<1x32xf32> to vector<16x32xf32>
      %61 = arith.addf %58, %60 : vector<16x32xf32>
      %62 = arith.truncf %61 : vector<16x32xf32> to vector<16x32xbf16>
      %c0_34 = arith.constant 0 : index
      %c0_35 = arith.constant 0 : index
      %63 = vector.load %arg10[%c0_34, %c0_35] : memref<16x32xbf16, #tpu.memory_space<vmem>>, vector<16x32xbf16>
      tpu.vector_store %arg10[%c0_34, %c0_35], %62 {strides = array<i32>} : memref<16x32xbf16, #tpu.memory_space<vmem>>, vector<16x32xbf16>,
    } else {
    }
    return
  }
  func.func @transform_0(%arg0: i32, %arg1: i32) -> (i32, i32) {
    %c0_i32 = arith.constant 0 : i32
    %c0_i32_0 = arith.constant 0 : i32
    return %arg0, %c0_i32 : i32, i32
  }
  func.func @transform_1(%arg0: i32, %arg1: i32) -> (i32, i32) {
    %c0_i32 = arith.constant 0 : i32
    %c0_i32_0 = arith.constant 0 : i32
    return %c0_i32, %arg1 : i32, i32
  }
  func.func @transform_2(%arg0: i32, %arg1: i32) -> (i32, i32) {
    %c0_i32 = arith.constant 0 : i32
    %c0_i32_0 = arith.constant 0 : i32
    return %c0_i32, %arg1 : i32, i32
  }
  func.func @transform_3(%arg0: i32, %arg1: i32) -> (i32, i32) {
    %c0_i32 = arith.constant 0 : i32
    %c0_i32_0 = arith.constant 0 : i32
    return %arg1, %c0_i32 : i32, i32
  }
  func.func @transform_4(%arg0: i32, %arg1: i32) -> (i32, i32) {
    %c0_i32 = arith.constant 0 : i32
    %c0_i32_0 = arith.constant 0 : i32
    %c0_i32_1 = arith.constant 0 : i32
    return %c0_i32, %c0_i32_0 : i32, i32
  }
  func.func @transform_5(%arg0: i32, %arg1: i32) -> (i32, i32) {
    %c0_i32 = arith.constant 0 : i32
    %c0_i32_0 = arith.constant 0 : i32
    return %arg0, %c0_i32 : i32, i32
  }
  func.func @transform_6(%arg0: i32, %arg1: i32) -> (i32, i32) {
    %c0_i32 = arith.constant 0 : i32
    %c0_i32_0 = arith.constant 0 : i32
    %c0_i32_1 = arith.constant 0 : i32
    return %c0_i32, %c0_i32_0 : i32, i32
  }
  func.func @transform_7(%arg0: i32, %arg1: i32) -> (i32, i32) {
    %c0_i32 = arith.constant 0 : i32
    %c0_i32_0 = arith.constant 0 : i32
    %c0_i32_1 = arith.constant 0 : i32
    return %c0_i32, %c0_i32_0 : i32, i32
  }
  func.func @transform_8(%arg0: i32, %arg1: i32) -> (i32, i32) {
    %c0_i32 = arith.constant 0 : i32
    %c0_i32_0 = arith.constant 0 : i32
    return %arg0, %c0_i32 : i32, i32
  }
}

module attributes {stable_mosaic.version = 11 : i64} {
  func.func @_dense_kernel(%arg0: i32, %arg1: i32, %arg2: i32, %arg3: memref<2x32xbf16, #tpu.memory_space<vmem>>, %arg4: memref<32x32xbf16, #tpu.memory_space<vmem>>, %arg5: memref<1x32xf32, #tpu.memory_space<vmem>>, %arg6: memref<2x32xf32, #tpu.memory_space<vmem>>, %arg7: memref<2x32xf32, #tpu.memory_space<vmem>>) attributes {dimension_semantics = [#tpu.dimension_semantics<parallel>, #tpu.dimension_semantics<parallel>, #tpu.dimension_semantics<arbitrary>], iteration_bounds = array<i64: 1, 1, 1>, scalar_prefetch = 0 : i64, scratch_operands = 1 : i64, tpu.core_type = #tpu.core_type<tc>, window_params = [{transform_indices = @transform_0, window_bounds = array<i64: 2, 32>}, {transform_indices = @transform_1, window_bounds = array<i64: 32, 32>}, {transform_indices = @transform_2, window_bounds = array<i64: 1, 32>}, {transform_indices = @transform_3, window_bounds = array<i64: 2, 32>}]} {
    %c0_i32 = arith.constant 0 : i32
    %0 = arith.cmpi eq, %arg2, %c0_i32 : i32
    %1 = arith.extui %0 : i1 to i32
    %c0_i32_0 = arith.constant 0 : i32
    %2 = arith.cmpi ne, %1, %c0_i32_0 : i32
    scf.if %2 {
      %cst_10 = arith.constant 0.000000e+00 : f32
      %12 = vector.broadcast %cst_10 : f32 to vector<2x32xf32>
      %c0_11 = arith.constant 0 : index
      %c0_12 = arith.constant 0 : index
      %13 = vector.load %arg7[%c0_11, %c0_12] : memref<2x32xf32, #tpu.memory_space<vmem>>, vector<2x32xf32>
      tpu.vector_store %arg7[%c0_11, %c0_12], %12 {strides = array<i32>} : memref<2x32xf32, #tpu.memory_space<vmem>>, vector<2x32xf32>,
    } else {
    }
    %c0 = arith.constant 0 : index
    %c0_1 = arith.constant 0 : index
    %3 = vector.load %arg7[%c0, %c0_1] : memref<2x32xf32, #tpu.memory_space<vmem>>, vector<2x32xf32>
    %c0_2 = arith.constant 0 : index
    %c0_3 = arith.constant 0 : index
    %4 = vector.load %arg3[%c0_2, %c0_3] : memref<2x32xbf16, #tpu.memory_space<vmem>>, vector<2x32xbf16>
    %c0_4 = arith.constant 0 : index
    %c0_5 = arith.constant 0 : index
    %5 = vector.load %arg4[%c0_4, %c0_5] : memref<32x32xbf16, #tpu.memory_space<vmem>>, vector<32x32xbf16>
    %cst = arith.constant dense<0.000000e+00> : vector<2x32xf32>
    %6 = tpu.matmul %4, %5, %cst {dimension_numbers = #tpu.dot_dimension_numbers<[1], [0], [0], [1], [0, 0, 1, 1], [], []>} : vector<2x32xbf16>, vector<32x32xbf16>, vector<2x32xf32> -> vector<2x32xf32>
    %7 = arith.addf %3, %6 : vector<2x32xf32>
    %c0_6 = arith.constant 0 : index
    %c0_7 = arith.constant 0 : index
    %8 = vector.load %arg7[%c0_6, %c0_7] : memref<2x32xf32, #tpu.memory_space<vmem>>, vector<2x32xf32>
    tpu.vector_store %arg7[%c0_6, %c0_7], %7 {strides = array<i32>} : memref<2x32xf32, #tpu.memory_space<vmem>>, vector<2x32xf32>,
    %c0_i32_8 = arith.constant 0 : i32
    %9 = arith.cmpi eq, %arg2, %c0_i32_8 : i32
    %10 = arith.extui %9 : i1 to i32
    %c0_i32_9 = arith.constant 0 : i32
    %11 = arith.cmpi ne, %10, %c0_i32_9 : i32
    scf.if %11 {
      %c0_10 = arith.constant 0 : index
      %c0_11 = arith.constant 0 : index
      %12 = vector.load %arg7[%c0_10, %c0_11] : memref<2x32xf32, #tpu.memory_space<vmem>>, vector<2x32xf32>
      %c0_12 = arith.constant 0 : index
      %c0_13 = arith.constant 0 : index
      %13 = vector.load %arg5[%c0_12, %c0_13] : memref<1x32xf32, #tpu.memory_space<vmem>>, vector<1x32xf32>
      %14 = vector.broadcast %13 : vector<1x32xf32> to vector<2x32xf32>
      %15 = arith.addf %12, %14 : vector<2x32xf32>
      %16 = math.tanh %15 : vector<2x32xf32>
      %c0_14 = arith.constant 0 : index
      %c0_15 = arith.constant 0 : index
      %17 = vector.load %arg6[%c0_14, %c0_15] : memref<2x32xf32, #tpu.memory_space<vmem>>, vector<2x32xf32>
      tpu.vector_store %arg6[%c0_14, %c0_15], %16 {strides = array<i32>} : memref<2x32xf32, #tpu.memory_space<vmem>>, vector<2x32xf32>,
    } else {
    }
    return
  }
  func.func @transform_0(%arg0: i32, %arg1: i32, %arg2: i32) -> (i32, i32) {
    %c0_i32 = arith.constant 0 : i32
    return %arg0, %arg2 : i32, i32
  }
  func.func @transform_1(%arg0: i32, %arg1: i32, %arg2: i32) -> (i32, i32) {
    %c0_i32 = arith.constant 0 : i32
    return %arg2, %arg1 : i32, i32
  }
  func.func @transform_2(%arg0: i32, %arg1: i32, %arg2: i32) -> (i32, i32) {
    %c0_i32 = arith.constant 0 : i32
    %c0_i32_0 = arith.constant 0 : i32
    return %c0_i32, %arg1 : i32, i32
  }
  func.func @transform_3(%arg0: i32, %arg1: i32, %arg2: i32) -> (i32, i32) {
    %c0_i32 = arith.constant 0 : i32
    return %arg0, %arg1 : i32, i32
  }
}

</mosaic_0001>

<llo_original>
// kernel: bert_for_classification.11
$region0: #{bert_for_classification.11}
  #allocation0 [shape = 'u32[]', space=smem, size = 0x4, offset = 0x4, fixed_abs, tag = 'smem constant byte address 0x4 - core index']
  #allocation1 [shape = 'u32[144,128]{1,0:T(1,128)}', space=vmem, size = 0x12000, scoped, tag = 'internal scratch']
  #allocation2 [shape = 'f32[16,96]{1,0:T(8,128)}', space=vmem, size = 0x2000, scoped, tag = 'scratch operand']
  %s0 = inlined_call_operand.vmem [shape: bf16[16,32], index: 0, kind: input, shape index: {}]
  %s1 = inlined_call_operand.vmem [shape: bf16[32,96], index: 1, kind: input, shape index: {}]
  %s2 = inlined_call_operand.vmem [shape: f32[1,96], index: 2, kind: input, shape index: {}]
  %s3 = inlined_call_operand.vmem [shape: bf16[16,96], index: 3, kind: output, shape index: {}]
  %s4 = sld [smem:[#allocation0]]
  $region30: #{bert_for_classification.11} parent=0
    _
  %s6 = ssub.s32 1, %s4
  %s7 = scalar_select 0, %s6, %s4
  // Predicated region
  $region2: #{bert_for_classification.11} parent=0 // pred_check
    _
  $region3: #{bert_for_classification.11} parent=0 // pred_check_branch
    %9 = sbr.rel (0) target = $region5
  $region4: #{bert_for_classification.11} parent=0 // pred_region
    _
  $region5: #{bert_for_classification.11} parent=0 // pred_fallthru
    _
  // Predicated region
  $region6: #{bert_for_classification.11} parent=0 // pred_check
    _
  $region7: #{bert_for_classification.11} parent=0 // pred_check_branch
    %11 = sbr.rel (0) target = $region9
  $region8: #{bert_for_classification.11} parent=0 // pred_region
    _
  $region9: #{bert_for_classification.11} parent=0 // pred_fallthru
    _
  // Predicated region
  $region10: #{bert_for_classification.11} parent=0 // pred_check
    _
  $region11: #{bert_for_classification.11} parent=0 // pred_check_branch
    %13 = sbr.rel (0) target = $region13
  $region12: #{bert_for_classification.11} parent=0 // pred_region
    _
  $region13: #{bert_for_classification.11} parent=0 // pred_fallthru
    _
  %p15 = scmp.eq.s32.totalorder 0, 0
  // Predicated region
  $region14: #{bert_for_classification.11} parent=0 // pred_check
    %p16 = pneg %p15
  $region15: #{bert_for_classification.11} parent=0 // pred_check_branch
    %18 = sbr.rel (%p16) target = $region17
  $region16: #{bert_for_classification.11} parent=0 // pred_region
    %vm19 = vcmask 785408
    %20 = vst.msk [vmem:[#allocation2] sm:$0xff] %vm19, 0.0
    %21 = vst.msk [vmem:[#allocation2 + $0x8] sm:$0xff] %vm19, 0.0
  $region17: #{bert_for_classification.11} parent=0 // pred_fallthru
    _
  %v22 = vld [vmem:[#allocation2] sm:$0xff]
  %v23 = vld [vmem:[#allocation2 + $0x8] sm:$0xff]
  %v24 = vld [vmem:[%s0] sm:$0xf]
  %v25 = vld [vmem:[%s0 + $0x4] sm:$0xf]
  %v26 = vld [vmem:[%s1] sm:$0xf]
  %v27 = vld [vmem:[%s1 + $0x4] sm:$0xf]
  %v28 = vld [vmem:[%s1 + $0x8] sm:$0xf]
  %v29 = vld [vmem:[%s1 + $0xc] sm:$0xf]
  %v32 = vunpack.c.l.b16 %v24
  %v33 = vunpack.c.l.b16 %v25
  %v34 = vpack.c.b16 %v33, %v32
  %v39 = vunpack.c.l.b16 %v26
  %v40 = vunpack.c.l.b16 %v27
  %v41 = vunpack.c.l.b16 %v28
  %v42 = vunpack.c.l.b16 %v29
  %v43 = vpack.c.b16 %v40, %v39
  %v44 = vpack.c.b16 %v42, %v41
  %vm47 = vcmask 261120
  %v49 = vsel %vm47, %v34, 0
  %51 = vmatprep.subr.bf16.mxu0 0
  %52 = vmatpush1.bf16.msra.mxu0 %v43
  %53 = vmatprep.subr.bf16.mxu0 0
  %54 = vmatpush1.bf16.msra.mxu0 %v44
  %55 = vmatprep.subr.bf16.mxu0 0
  %56 = vmatpush1.bf16.msra.mxu0 0
  %57 = vmatprep.subr.bf16.mxu0 0
  %58 = vmatpush1.bf16.msra.mxu0 0
  %59 = vmatprep.subr.bf16.mxu0 0
  %60 = vmatpush1.bf16.msra.mxu0 0
  %61 = vmatprep.subr.bf16.mxu0 0
  %62 = vmatpush1.bf16.msra.mxu0 0
  %63 = vmatprep.subr.bf16.mxu0 0
  %64 = vmatpush1.bf16.msra.mxu0 0
  %65 = vmatprep.subr.bf16.mxu0 0
  %66 = vmatpush1.bf16.msra.mxu0 0
  %67 = vmatprep.subr.bf16.mxu0 0
  %68 = vmatpush1.bf16.msra.mxu0 0
  %69 = vmatprep.subr.bf16.mxu0 0
  %70 = vmatpush1.bf16.msra.mxu0 0
  %71 = vmatprep.subr.bf16.mxu0 0
  %72 = vmatpush1.bf16.msra.mxu0 0
  %73 = vmatprep.subr.bf16.mxu0 0
  %74 = vmatpush1.bf16.msra.mxu0 0
  %75 = vmatprep.subr.bf16.mxu0 0
  %76 = vmatpush1.bf16.msra.mxu0 0
  %77 = vmatprep.subr.bf16.mxu0 0
  %78 = vmatpush1.bf16.msra.mxu0 0
  %79 = vmatprep.subr.bf16.mxu0 0
  %80 = vmatpush1.bf16.msra.mxu0 0
  %81 = vmatprep.subr.bf16.mxu0 0
  %82 = vmatpush1.bf16.msra.mxu0 0
  %83 = vmatprep.mubr.bf16.mxu0 0
  %84 = vmatmul.mubr.bf16.gmra.mrb[0].mxu0 %v49
  %v85 = vpop.f32.mrb[0].mxu0
  %v86 = vadd.f32 0.0, %v85
  %v87 = vpop.f32.mrb[0].mxu0
  %v88 = vpop.f32.mrb[0].mxu0
  %v89 = vadd.f32 0.0, %v88
  %v90 = vpop.f32.mrb[0].mxu0
  %91 = vdwg.mxu0
  %v92 = vadd.f32 %v22, %v86
  %v93 = vadd.f32 %v23, %v89
  %vm94 = vcmask 785408
  %95 = vst.msk [vmem:[#allocation2] sm:$0xff] %vm94, %v92
  %96 = vst.msk [vmem:[#allocation2 + $0x8] sm:$0xff] %vm94, %v93
  // Predicated region
  $region18: #{bert_for_classification.11} parent=0 // pred_check
    %p97 = pneg %p15
  $region19: #{bert_for_classification.11} parent=0 // pred_check_branch
    %99 = sbr.rel (%p97) target = $region21
  $region20: #{bert_for_classification.11} parent=0 // pred_region
    %v100 = vld [vmem:[#allocation2] sm:$0xff]
    %v101 = vld [vmem:[#allocation2 + $0x8] sm:$0xff]
    %v102 = vld [vmem:[%s2] sm:$0x1]
    %v104 = vlaneseq
    %v105 = vshrl.u32 %v104, 7
    %v106 = vsub.s32 0, %v105
    %v107 = vrot.slane %v102, %v106
    %v109 = vadd.f32 %v100, %v107
    %v110 = vadd.f32 %v101, %v107
    %v111 = vpack.c.bf16 %v110, %v109
    %v113 = vunpack.c.l.b16 %v111
    %v114 = vunpack.c.h.b16 %v111
    %v115 = vpack.c.b16 %v113, %v113
    %v116 = vpack.c.b16 %v114, %v114
    %vm119 = vcmask 781312
    %120 = vst.msk [vmem:[%s3] sm:$0xf] %vm119, %v115
    %121 = vst.msk [vmem:[%s3 + $0x4] sm:$0xf] %vm119, %v116
  $region21: #{bert_for_classification.11} parent=0 // pred_fallthru
    _
  // Predicated region
  $region22: #{bert_for_classification.11} parent=0 // pred_check
    _
  $region23: #{bert_for_classification.11} parent=0 // pred_check_branch
    %123 = sbr.rel (0) target = $region25
  $region24: #{bert_for_classification.11} parent=0 // pred_region
    _
  $region25: #{bert_for_classification.11} parent=0 // pred_fallthru
    _
  // Predicated region
  $region26: #{bert_for_classification.11} parent=0 // pred_check
    _
  $region27: #{bert_for_classification.11} parent=0 // pred_check_branch
    %125 = sbr.rel (0) target = $region29
  $region28: #{bert_for_classification.11} parent=0 // pred_region
    _
  $region29: #{bert_for_classification.11} parent=0 // pred_fallthru
    _

// kernel: bert_for_classification.10
$region0: #{bert_for_classification.10}
  #allocation0 [shape = 'u32[]', space=smem, size = 0x4, offset = 0x4, fixed_abs, tag = 'smem constant byte address 0x4 - core index']
  #allocation1 [shape = 'u32[144,128]{1,0:T(1,128)}', space=vmem, size = 0x12000, scoped, tag = 'internal scratch']
  %s0 = inlined_call_operand.vmem [shape: bf16[16,32], index: 0, kind: input, shape index: {}]
  %s1 = inlined_call_operand.vmem [shape: f32[1,32], index: 1, kind: input, shape index: {}]
  %s2 = inlined_call_operand.vmem [shape: f32[1,32], index: 2, kind: input, shape index: {}]
  %s3 = inlined_call_operand.vmem [shape: bf16[16,32], index: 3, kind: output, shape index: {}]
  %s4 = sld [smem:[#allocation0]]
  $region22: #{bert_for_classification.10} parent=0
    _
  %s6 = ssub.s32 1, %s4
  %s7 = scalar_select 0, %s6, %s4
  // Predicated region
  $region2: #{bert_for_classification.10} parent=0 // pred_check
    _
  $region3: #{bert_for_classification.10} parent=0 // pred_check_branch
    %9 = sbr.rel (0) target = $region5
  $region4: #{bert_for_classification.10} parent=0 // pred_region
    _
  $region5: #{bert_for_classification.10} parent=0 // pred_fallthru
    _
  // Predicated region
  $region6: #{bert_for_classification.10} parent=0 // pred_check
    _
  $region7: #{bert_for_classification.10} parent=0 // pred_check_branch
    %11 = sbr.rel (0) target = $region9
  $region8: #{bert_for_classification.10} parent=0 // pred_region
    _
  $region9: #{bert_for_classification.10} parent=0 // pred_fallthru
    _
  // Predicated region
  $region10: #{bert_for_classification.10} parent=0 // pred_check
    _
  $region11: #{bert_for_classification.10} parent=0 // pred_check_branch
    %13 = sbr.rel (0) target = $region13
  $region12: #{bert_for_classification.10} parent=0 // pred_region
    _
  $region13: #{bert_for_classification.10} parent=0 // pred_fallthru
    _
  %v14 = vld [vmem:[%s0] sm:$0xf]
  %v15 = vld [vmem:[%s0 + $0x4] sm:$0xf]
  %v16 = vunpack.c.l.bf16 %v14
  %v17 = vunpack.c.l.bf16 %v15
  %vm18 = vcmask 261120
  %v19 = vsel %vm18, %v16, 0.0
  %20 = vadd.xlane.f32.xlu0 %v19
  %v21 = vpop.xlane.xlu0 %20
  %v22 = vsel %vm18, %v17, 0.0
  %23 = vadd.xlane.f32.xlu0 %v22
  %v24 = vpop.xlane.xlu0 %23
  %v25 = vrcp.pop 32.0
  %v26 = vmul.f32 %v21, %v25
  %v27 = vmul.f32 %v24, %v25
  %v28 = vsub.f32 %v16, %v26
  %v29 = vsub.f32 %v17, %v27
  %v30 = vmul.f32 %v28, %v28
  %v31 = vmul.f32 %v29, %v29
  %v32 = vsel %vm18, %v30, 0.0
  %33 = vadd.xlane.f32.xlu0 %v32
  %v34 = vpop.xlane.xlu0 %33
  %v35 = vsel %vm18, %v31, 0.0
  %36 = vadd.xlane.f32.xlu0 %v35
  %v37 = vpop.xlane.xlu0 %36
  %v38 = vmul.f32 %v34, %v25
  %v39 = vmul.f32 %v37, %v25
  %v40 = vadd.f32 %v38, 1e-12
  %v41 = vadd.f32 %v39, 1e-12
  %v42 = vrsqrt.pop %v40
  %v43 = vrsqrt.pop %v41
  %v44 = vmul.f32 %v28, %v42
  %v45 = vmul.f32 %v29, %v43
  %v46 = vld [vmem:[%s1] sm:$0x1]
  %v48 = vlaneseq
  %v49 = vshrl.u32 %v48, 7
  %v50 = vsub.s32 0, %v49
  %v51 = vrot.slane %v46, %v50
  %v53 = vmul.f32 %v44, %v51
  %v54 = vmul.f32 %v45, %v51
  %v55 = vld [vmem:[%s2] sm:$0x1]
  %v57 = vlaneseq
  %v58 = vshrl.u32 %v57, 7
  %v59 = vsub.s32 0, %v58
  %v60 = vrot.slane %v55, %v59
  %v62 = vadd.f32 %v53, %v60
  %v63 = vadd.f32 %v54, %v60
  %v64 = vpack.c.bf16 %v63, %v62
  %v66 = vunpack.c.l.b16 %v64
  %v67 = vunpack.c.h.b16 %v64
  %v68 = vpack.c.b16 %v66, %v66
  %v69 = vpack.c.b16 %v67, %v67
  %vm72 = vcmask 257024
  %73 = vst.msk [vmem:[%s3] sm:$0xf] %vm72, %v68
  %74 = vst.msk [vmem:[%s3 + $0x4] sm:$0xf] %vm72, %v69
  // Predicated region
  $region14: #{bert_for_classification.10} parent=0 // pred_check
    _
  $region15: #{bert_for_classification.10} parent=0 // pred_check_branch
    %76 = sbr.rel (0) target = $region17
  $region16: #{bert_for_classification.10} parent=0 // pred_region
    _
  $region17: #{bert_for_classification.10} parent=0 // pred_fallthru
    _
  // Predicated region
  $region18: #{bert_for_classification.10} parent=0 // pred_check
    _
  $region19: #{bert_for_classification.10} parent=0 // pred_check_branch
    %78 = sbr.rel (0) target = $region21
  $region20: #{bert_for_classification.10} parent=0 // pred_region
    _
  $region21: #{bert_for_classification.10} parent=0 // pred_fallthru
    _

// kernel: bert_for_classification.12
$region0: #{bert_for_classification.12}
  #allocation0 [shape = 'u32[]', space=smem, size = 0x4, offset = 0x4, fixed_abs, tag = 'smem constant byte address 0x4 - core index']
  #allocation1 [shape = 'u32[144,128]{1,0:T(1,128)}', space=vmem, size = 0x12000, scoped, tag = 'internal scratch']
  %s0 = inlined_call_operand.vmem [shape: bf16[2,8,96], index: 0, kind: input, shape index: {}]
  %s1 = inlined_call_operand.vmem [shape: f32[2,1,8], index: 1, kind: input, shape index: {}]
  %s2 = inlined_call_operand.vmem [shape: bf16[2,8,32], index: 2, kind: output, shape index: {}]
  %s3 = sld [smem:[#allocation0]]
  $region41: #{bert_for_classification.12} parent=0
    _
  %s5 = ssub.s32 1, %s3
  %s6 = scalar_select 0, %s5, %s3
  loop: start=0, step=1, limit=4
  $region2: #{bert_for_classification.12} parent=0 // loop_pre_header
    _
  $region3: #{bert_for_classification.12} parent=0 // loop_header
    %s8 = sphi 0, %s12
    %p9 = scmp.ge.s32.totalorder %s8, 4
    %s15 = sphi 0, %s27
    %s16 = sphi 0, %s23
    %s17 = sphi 0, %s15
    %s18 = sphi 0, %s16
    %s19 = sphi 0, %s17
    %s20 = sphi 0, %s18
    %s32 = sphi 0, %s34
    %s35 = sphi 0, %s32
    %s36 = sphi 0, %s35
    %s52 = sphi 0, %s36
    %s58 = sphi 0, %s60
    %s61 = sphi 0, %s58
    %s62 = sphi 0, %s61
    %s78 = sphi 0, %s62
    %s86 = sphi 0, %s88
    %s89 = sphi 0, %s86
    %s90 = sphi 0, %s89
    %s106 = sphi 0, %s90
  $region4: #{bert_for_classification.12} parent=0 // loop_header_branch
    %11 = sbr.rel (%p9) target = $region8
  $region5: #{bert_for_classification.12} parent=0 // loop_body
    %s13 = ssub.s32 %s8, 1
    %s14 = ssub.s32 %s8, 2
    %s21 = sadd.s32 1, %s16
    %p22 = scmp.ge.s32.totalorder %s21, 1
    %s23 = scalar_select %p22, 0, %s21
    %s24 = sadd.s32 1, %s15
    %s25 = scalar_select %p22, %s24, %s15
    %p26 = scmp.ge.s32.totalorder %s25, 2
    %s27 = scalar_select %p26, 0, %s25
    %s28 = ssub.s32 %s15, %s27
    %s29 = ssub.s32 %s16, %s23
    %s30 = sor.u32 %s28, %s29
    %p31 = scmp.eq.s32.totalorder %s30, 0
    %s33 = sadd.s32 %s32, 1
    %s34 = scalar_select %p31, %s32, %s33
    %p37 = pneg %p31
    %p38 = scmp.eq.s32.totalorder %s8, 1
    %p39 = por %p37, %p38
    %p40 = scmp.ne.s32.totalorder %s32, %s35
    %p41 = scmp.eq.s32.totalorder %s8, 0
    %p42 = por %p40, %p41
    %p43 = scmp.ne.s32.totalorder %s32, %s35
    %p44 = scmp.eq.s32.totalorder %s13, 1
    %p45 = por %p43, %p44
    %p46 = scmp.ne.s32.totalorder %s35, %s36
    %p47 = scmp.eq.s32.totalorder %s13, 0
    %p48 = por %p46, %p47
    %p49 = scmp.ne.s32.totalorder %s35, %s36
    %p50 = scmp.eq.s32.totalorder %s14, 1
    %p51 = por %p49, %p50
    %p53 = scmp.ne.s32.totalorder %s36, %s52
    %p54 = scmp.eq.s32.totalorder %s14, 0
    %p55 = por %p53, %p54
    %s56 = ssub.s32 %s15, %s27
    %p57 = scmp.eq.s32.totalorder %s56, 0
    %s59 = sadd.s32 %s58, 1
    %s60 = scalar_select %p57, %s58, %s59
    %p63 = pneg %p57
    %p64 = scmp.eq.s32.totalorder %s8, 1
    %p65 = por %p63, %p64
    %p66 = scmp.ne.s32.totalorder %s58, %s61
    %p67 = scmp.eq.s32.totalorder %s8, 0
    %p68 = por %p66, %p67
    %p69 = scmp.ne.s32.totalorder %s58, %s61
    %p70 = scmp.eq.s32.totalorder %s13, 1
    %p71 = por %p69, %p70
    %p72 = scmp.ne.s32.totalorder %s61, %s62
    %p73 = scmp.eq.s32.totalorder %s13, 0
    %p74 = por %p72, %p73
    %p75 = scmp.ne.s32.totalorder %s61, %s62
    %p76 = scmp.eq.s32.totalorder %s14, 1
    %p77 = por %p75, %p76
    %p79 = scmp.ne.s32.totalorder %s62, %s78
    %p80 = scmp.eq.s32.totalorder %s14, 0
    %p81 = por %p79, %p80
    %s82 = ssub.s32 %s15, %s27
    %s83 = ssub.s32 %s16, %s23
    %s84 = sor.u32 %s82, %s83
    %p85 = scmp.eq.s32.totalorder %s84, 0
    %s87 = sadd.s32 %s86, 1
    %s88 = scalar_select %p85, %s86, %s87
    %p91 = pneg %p85
    %p92 = scmp.eq.s32.totalorder %s8, 1
    %p93 = por %p91, %p92
    %p94 = scmp.ne.s32.totalorder %s86, %s89
    %p95 = scmp.eq.s32.totalorder %s8, 0
    %p96 = por %p94, %p95
    %p97 = scmp.ne.s32.totalorder %s86, %s89
    %p98 = scmp.eq.s32.totalorder %s13, 1
    %p99 = por %p97, %p98
    %p100 = scmp.ne.s32.totalorder %s89, %s90
    %p101 = scmp.eq.s32.totalorder %s13, 0
    %p102 = por %p100, %p101
    %p103 = scmp.ne.s32.totalorder %s89, %s90
    %p104 = scmp.eq.s32.totalorder %s14, 1
    %p105 = por %p103, %p104
    %p107 = scmp.ne.s32.totalorder %s90, %s106
    %p108 = scmp.eq.s32.totalorder %s14, 0
    %p109 = por %p107, %p108
    %p110 = scmp.le.s32.totalorder 1, %s8
    %p111 = scmp.lt.s32.totalorder %s8, 3
    %p112 = pnand %p110, %p111
    %p113 = pneg %p112
    // Predicated region
    $region9: #{bert_for_classification.12} parent=5 // pred_check
      _
    $region10: #{bert_for_classification.12} parent=5 // pred_check_branch
      %115 = sbr.rel (%p112) target = $region12
    $region11: #{bert_for_classification.12} parent=5 // pred_region
      %s116 = ssub.s32 %s8, 1
    $region12: #{bert_for_classification.12} parent=5 // pred_fallthru
      _
    %p117 = scmp.lt.s32.totalorder %s8, 2
    // Predicated region
    $region13: #{bert_for_classification.12} parent=5 // pred_check
      %p118 = pneg %p117
    $region14: #{bert_for_classification.12} parent=5 // pred_check_branch
      %120 = sbr.rel (%p118) target = $region16
    $region15: #{bert_for_classification.12} parent=5 // pred_region
      // Predicated region
      $region17: #{bert_for_classification.12} parent=15 // pred_check
        %p121 = pneg %p42
      $region18: #{bert_for_classification.12} parent=15 // pred_check_branch
        %123 = sbr.rel (%p121) target = $region20
      $region19: #{bert_for_classification.12} parent=15 // pred_region
        %p124 = scmp.lt.s32.totalorder %s15, 1
        %s125 = scalar_select %p124, %s15, 1
        %p126 = scmp.lt.s32.totalorder %s16, 0
        %s127 = scalar_select %p126, %s16, 0
        %s128 = sadd.s32 %s127, %s125
        %s129 = smul.addr %s128, 4
        %s130 = scalar_lea.vmem %s0, %s129
      $region20: #{bert_for_classification.12} parent=15 // pred_fallthru
        _
      // Predicated region
      $region21: #{bert_for_classification.12} parent=15 // pred_check
        %p131 = pneg %p68
      $region22: #{bert_for_classification.12} parent=15 // pred_check_branch
        %133 = sbr.rel (%p131) target = $region24
      $region23: #{bert_for_classification.12} parent=15 // pred_region
        %p134 = scmp.lt.s32.totalorder %s15, 1
        %s135 = scalar_select %p134, %s15, 1
        %s136 = scalar_lea.vmem %s1, %s135
      $region24: #{bert_for_classification.12} parent=15 // pred_fallthru
        _
    $region16: #{bert_for_classification.12} parent=5 // pred_fallthru
      _
    %p137 = scmp.le.s32.totalorder 1, %s8
    %p138 = scmp.lt.s32.totalorder %s8, 3
    %p139 = pnand %p137, %p138
    %p140 = pneg %p139
    // Predicated region
    $region25: #{bert_for_classification.12} parent=5 // pred_check
      _
    $region26: #{bert_for_classification.12} parent=5 // pred_check_branch
      %142 = sbr.rel (%p139) target = $region28
    $region27: #{bert_for_classification.12} parent=5 // pred_region
      %s143 = ssub.s32 %s8, 1
      %p144 = scmp.lt.s32.totalorder %s17, 1
      %s145 = scalar_select %p144, %s17, 1
      %p146 = scmp.lt.s32.totalorder %s18, 0
      %s147 = scalar_select %p146, %s18, 0
      %s148 = sadd.s32 %s147, %s145
      %s149 = smul.addr %s148, 4
      %s150 = scalar_lea.vmem %s0, %s149
      %p151 = pneg %p48
      %p152 = pneg %p45
      %p153 = scmp.lt.s32.totalorder %s17, 1
      %s154 = scalar_select %p153, %s17, 1
      %s155 = scalar_lea.vmem %s1, %s154
      %p156 = pneg %p74
      %p157 = pneg %p71
      %p158 = pneg %p102
      %p159 = pneg %p99
      %p160 = scmp.lt.s32.totalorder %s17, 1
      %s161 = scalar_select %p160, %s17, 1
      %p162 = scmp.lt.s32.totalorder %s18, 0
      %s163 = scalar_select %p162, %s18, 0
      %s164 = sadd.s32 %s163, %s161
      %s165 = smul.addr %s164, 4
      %s166 = scalar_lea.vmem %s2, %s165
      %p167 = scmp.lt.s32.totalorder %s17, 1
      %s168 = scalar_select %p167, %s17, 1
      %p169 = scmp.lt.s32.totalorder %s18, 0
      %s170 = scalar_select %p169, %s18, 0
      %s171 = sadd.s32 %s170, %s168
      %s172 = smul.addr %s171, 4
      %s173 = scalar_lea.vmem %s0, %s172
      %p174 = scmp.lt.s32.totalorder %s17, 1
      %s175 = scalar_select %p174, %s17, 1
      %s176 = scalar_lea.vmem %s1, %s175
      %p177 = scmp.lt.s32.totalorder %s17, 1
      %s178 = scalar_select %p177, %s17, 1
      %p179 = scmp.lt.s32.totalorder %s18, 0
      %s180 = scalar_select %p179, %s18, 0
      %s181 = sadd.s32 %s180, %s178
      %s182 = smul.addr %s181, 4
      %s183 = scalar_lea.vmem %s2, %s182
      %v185 = vld [vmem:[%s176] sm:$0x1]
      %v186 = vld [vmem:[%s173] sm:$0xf]
      %v188 = vunpack.c.l.b16 %v186
      %v189 = vpack.c.b16 %v188, %v188
      %190 = vrot.lane.b32.xlu0 %v189, 96
      %v191 = vpop.permute.xlu0 %190
      %vm192 = vcmask 130048
      %v194 = vsel %vm192, %v186, 0
      %v197 = vsel %vm192, %v191, 0
      %199 = vmatprep.subr.bf16.mxu0 0
      %200 = vmatpush1.bf16.xpose.msra.mxu0 %v197
      %201 = vmatprep.subr.bf16.mxu0 0
      %202 = vmatpush1.bf16.xpose.msra.mxu0 0
      %203 = vmatprep.subr.bf16.mxu0 0
      %204 = vmatpush1.bf16.xpose.msra.mxu0 0
      %205 = vmatprep.subr.bf16.mxu0 0
      %206 = vmatpush1.bf16.xpose.msra.mxu0 0
      %207 = vmatprep.subr.bf16.mxu0 0
      %208 = vmatpush1.bf16.xpose.msra.mxu0 0
      %209 = vmatprep.subr.bf16.mxu0 0
      %210 = vmatpush1.bf16.xpose.msra.mxu0 0
      %211 = vmatprep.subr.bf16.mxu0 0
      %212 = vmatpush1.bf16.xpose.msra.mxu0 0
      %213 = vmatprep.subr.bf16.mxu0 0
      %214 = vmatpush1.bf16.xpose.msra.mxu0 0
      %215 = vmatprep.subr.bf16.mxu0 0
      %216 = vmatpush1.bf16.xpose.msra.mxu0 0
      %217 = vmatprep.subr.bf16.mxu0 0
      %218 = vmatpush1.bf16.xpose.msra.mxu0 0
      %219 = vmatprep.subr.bf16.mxu0 0
      %220 = vmatpush1.bf16.xpose.msra.mxu0 0
      %221 = vmatprep.subr.bf16.mxu0 0
      %222 = vmatpush1.bf16.xpose.msra.mxu0 0
      %223 = vmatprep.subr.bf16.mxu0 0
      %224 = vmatpush1.bf16.xpose.msra.mxu0 0
      %225 = vmatprep.subr.bf16.mxu0 0
      %226 = vmatpush1.bf16.xpose.msra.mxu0 0
      %227 = vmatprep.subr.bf16.mxu0 0
      %228 = vmatpush1.bf16.xpose.msra.mxu0 0
      %229 = vmatprep.subr.bf16.mxu0 0
      %230 = vmatpush1.bf16.xpose.msra.mxu0 0
      %231 = vmatprep.mubr.bf16.mxu0 0
      %232 = vmatmul.mubr.bf16.gmra.mrb[0].mxu0 %v194
      %v233 = vpop.f32.mrb[0].mxu0
      %v234 = vadd.f32 0.0, %v233
      %v235 = vpop.f32.mrb[0].mxu0
      %v236 = vpop.f32.mrb[0].mxu0
      %v237 = vpop.f32.mrb[0].mxu0
      %238 = vdwg.mxu0
      %v239 = vmul.f32 %v234, 0.25
      %v241 = vlaneseq
      %v242 = vshrl.u32 %v241, 7
      %v243 = vsub.s32 0, %v242
      %v244 = vrot.slane %v185, %v243
      %v246 = vadd.f32 %v239, %v244
      %vm247 = vcmask 64512
      %v248 = vsel %vm247, %v246, -inf
      %249 = vmax.xlane.f32.xlu0 %v248
      %v250 = vpop.xlane.xlu0 %249
      %v251 = vsub.f32 %v246, %v250
      %v252 = vmul.f32 %v251, 1.442695
      %v253 = vpow.pop %v252
      %v254 = vsel %vm247, %v253, 0.0
      %255 = vadd.xlane.f32.xlu0 %v254
      %v256 = vpop.xlane.xlu0 %255
      %v257 = vrcp.pop %v256
      %v258 = vmul.f32 %v253, %v257
      %v259 = vpack.c.bf16 %v258, %v258
      %260 = vrot.lane.b32.xlu0 %v189, 64
      %v261 = vpop.permute.xlu0 %260
      %v263 = vsel %vm247, %v259, 0
      %vm265 = vcmask 1043456
      %v267 = vsel %vm265, %v261, 0
      %269 = vmatprep.subr.bf16.mxu0 0
      %270 = vmatpush1.bf16.msra.mxu0 %v267
      %271 = vmatprep.subr.bf16.mxu0 0
      %272 = vmatpush1.bf16.msra.mxu0 0
      %273 = vmatprep.subr.bf16.mxu0 0
      %274 = vmatpush1.bf16.msra.mxu0 0
      %275 = vmatprep.subr.bf16.mxu0 0
      %276 = vmatpush1.bf16.msra.mxu0 0
      %277 = vmatprep.subr.bf16.mxu0 0
      %278 = vmatpush1.bf16.msra.mxu0 0
      %279 = vmatprep.subr.bf16.mxu0 0
      %280 = vmatpush1.bf16.msra.mxu0 0
      %281 = vmatprep.subr.bf16.mxu0 0
      %282 = vmatpush1.bf16.msra.mxu0 0
      %283 = vmatprep.subr.bf16.mxu0 0
      %284 = vmatpush1.bf16.msra.mxu0 0
      %285 = vmatprep.subr.bf16.mxu0 0
      %286 = vmatpush1.bf16.msra.mxu0 0
      %287 = vmatprep.subr.bf16.mxu0 0
      %288 = vmatpush1.bf16.msra.mxu0 0
      %289 = vmatprep.subr.bf16.mxu0 0
      %290 = vmatpush1.bf16.msra.mxu0 0
      %291 = vmatprep.subr.bf16.mxu0 0
      %292 = vmatpush1.bf16.msra.mxu0 0
      %293 = vmatprep.subr.bf16.mxu0 0
      %294 = vmatpush1.bf16.msra.mxu0 0
      %295 = vmatprep.subr.bf16.mxu0 0
      %296 = vmatpush1.bf16.msra.mxu0 0
      %297 = vmatprep.subr.bf16.mxu0 0
      %298 = vmatpush1.bf16.msra.mxu0 0
      %299 = vmatprep.subr.bf16.mxu0 0
      %300 = vmatpush1.bf16.msra.mxu0 0
      %301 = vmatprep.mubr.bf16.mxu0 0
      %302 = vmatmul.mubr.bf16.gmra.mrb[0].mxu0 %v263
      %v303 = vpop.f32.mrb[0].mxu0
      %v304 = vadd.f32 0.0, %v303
      %v305 = vpop.f32.mrb[0].mxu0
      %v306 = vpop.f32.mrb[0].mxu0
      %v307 = vpop.f32.mrb[0].mxu0
      %308 = vdwg.mxu0
      %v309 = vpack.c.bf16 %v304, %v304
      %vm310 = vcmask 125952
      %311 = vst.msk [vmem:[%s183] sm:$0xf] %vm310, %v309
      %v312 = vld [vmem:[%s173] sm:$0xf]
      %v314 = vunpack.c.l.b16 %v312
      %v315 = vpack.c.b16 %v314, %v314
      %316 = vrot.lane.b32.xlu0 %v315, 112
      %v317 = vpop.permute.xlu0 %316
      %318 = vrot.lane.b32.xlu0 %v315, 80
      %v319 = vpop.permute.xlu0 %318
      %v321 = vsel %vm192, %v317, 0
      %v324 = vsel %vm192, %v319, 0
      %326 = vmatprep.subr.bf16.mxu0 0
      %327 = vmatpush1.bf16.xpose.msra.mxu0 %v324
      %328 = vmatprep.subr.bf16.mxu0 0
      %329 = vmatpush1.bf16.xpose.msra.mxu0 0
      %330 = vmatprep.subr.bf16.mxu0 0
      %331 = vmatpush1.bf16.xpose.msra.mxu0 0
      %332 = vmatprep.subr.bf16.mxu0 0
      %333 = vmatpush1.bf16.xpose.msra.mxu0 0
      %334 = vmatprep.subr.bf16.mxu0 0
      %335 = vmatpush1.bf16.xpose.msra.mxu0 0
      %336 = vmatprep.subr.bf16.mxu0 0
      %337 = vmatpush1.bf16.xpose.msra.mxu0 0
      %338 = vmatprep.subr.bf16.mxu0 0
      %339 = vmatpush1.bf16.xpose.msra.mxu0 0
      %340 = vmatprep.subr.bf16.mxu0 0
      %341 = vmatpush1.bf16.xpose.msra.mxu0 0
      %342 = vmatprep.subr.bf16.mxu0 0
      %343 = vmatpush1.bf16.xpose.msra.mxu0 0
      %344 = vmatprep.subr.bf16.mxu0 0
      %345 = vmatpush1.bf16.xpose.msra.mxu0 0
      %346 = vmatprep.subr.bf16.mxu0 0
      %347 = vmatpush1.bf16.xpose.msra.mxu0 0
      %348 = vmatprep.subr.bf16.mxu0 0
      %349 = vmatpush1.bf16.xpose.msra.mxu0 0
      %350 = vmatprep.subr.bf16.mxu0 0
      %351 = vmatpush1.bf16.xpose.msra.mxu0 0
      %352 = vmatprep.subr.bf16.mxu0 0
      %353 = vmatpush1.bf16.xpose.msra.mxu0 0
      %354 = vmatprep.subr.bf16.mxu0 0
      %355 = vmatpush1.bf16.xpose.msra.mxu0 0
      %356 = vmatprep.subr.bf16.mxu0 0
      %357 = vmatpush1.bf16.xpose.msra.mxu0 0
      %358 = vmatprep.mubr.bf16.mxu0 0
      %359 = vmatmul.mubr.bf16.gmra.mrb[0].mxu0 %v321
      %v360 = vpop.f32.mrb[0].mxu0
      %v361 = vadd.f32 0.0, %v360
      %v362 = vpop.f32.mrb[0].mxu0
      %v363 = vpop.f32.mrb[0].mxu0
      %v364 = vpop.f32.mrb[0].mxu0
      %365 = vdwg.mxu0
      %v366 = vmul.f32 %v361, 0.25
      %v367 = vadd.f32 %v366, %v244
      %v368 = vsel %vm247, %v367, -inf
      %369 = vmax.xlane.f32.xlu0 %v368
      %v370 = vpop.xlane.xlu0 %369
      %v371 = vsub.f32 %v367, %v370
      %v372 = vmul.f32 %v371, 1.442695
      %v373 = vpow.pop %v372
      %v374 = vsel %vm247, %v373, 0.0
      %375 = vadd.xlane.f32.xlu0 %v374
      %v376 = vpop.xlane.xlu0 %375
      %v377 = vrcp.pop %v376
      %v378 = vmul.f32 %v373, %v377
      %v379 = vpack.c.bf16 %v378, %v378
      %380 = vrot.lane.b32.xlu0 %v315, 48
      %v381 = vpop.permute.xlu0 %380
      %v383 = vsel %vm247, %v379, 0
      %v386 = vsel %vm265, %v381, 0
      %388 = vmatprep.subr.bf16.mxu0 0
      %389 = vmatpush1.bf16.msra.mxu0 %v386
      %390 = vmatprep.subr.bf16.mxu0 0
      %391 = vmatpush1.bf16.msra.mxu0 0
      %392 = vmatprep.subr.bf16.mxu0 0
      %393 = vmatpush1.bf16.msra.mxu0 0
      %394 = vmatprep.subr.bf16.mxu0 0
      %395 = vmatpush1.bf16.msra.mxu0 0
      %396 = vmatprep.subr.bf16.mxu0 0
      %397 = vmatpush1.bf16.msra.mxu0 0
      %398 = vmatprep.subr.bf16.mxu0 0
      %399 = vmatpush1.bf16.msra.mxu0 0
      %400 = vmatprep.subr.bf16.mxu0 0
      %401 = vmatpush1.bf16.msra.mxu0 0
      %402 = vmatprep.subr.bf16.mxu0 0
      %403 = vmatpush1.bf16.msra.mxu0 0
      %404 = vmatprep.subr.bf16.mxu0 0
      %405 = vmatpush1.bf16.msra.mxu0 0
      %406 = vmatprep.subr.bf16.mxu0 0
      %407 = vmatpush1.bf16.msra.mxu0 0
      %408 = vmatprep.subr.bf16.mxu0 0
      %409 = vmatpush1.bf16.msra.mxu0 0
      %410 = vmatprep.subr.bf16.mxu0 0
      %411 = vmatpush1.bf16.msra.mxu0 0
      %412 = vmatprep.subr.bf16.mxu0 0
      %413 = vmatpush1.bf16.msra.mxu0 0
      %414 = vmatprep.subr.bf16.mxu0 0
      %415 = vmatpush1.bf16.msra.mxu0 0
      %416 = vmatprep.subr.bf16.mxu0 0
      %417 = vmatpush1.bf16.msra.mxu0 0
      %418 = vmatprep.subr.bf16.mxu0 0
      %419 = vmatpush1.bf16.msra.mxu0 0
      %420 = vmatprep.mubr.bf16.mxu0 0
      %421 = vmatmul.mubr.bf16.gmra.mrb[0].mxu0 %v383
      %v422 = vpop.f32.mrb[0].mxu0
      %v423 = vadd.f32 0.0, %v422
      %v424 = vpop.f32.mrb[0].mxu0
      %v425 = vpop.f32.mrb[0].mxu0
      %v426 = vpop.f32.mrb[0].mxu0
      %427 = vdwg.mxu0
      %v428 = vpack.c.bf16 %v423, %v423
      %v430 = vunpack.c.l.b16 %v428
      %v431 = vpack.c.b16 %v430, %v430
      %432 = vrot.lane.b32.xlu0 %v431, 16
      %v433 = vpop.permute.xlu0 %432
      %vm435 = vcmask 257152
      %436 = vst.msk [vmem:[%s183] sm:$0xf] %vm435, %v433
      %p437 = scmp.lt.s32.totalorder %s17, 1
      %s438 = scalar_select %p437, %s17, 1
      %p439 = scmp.lt.s32.totalorder %s18, 0
      %s440 = scalar_select %p439, %s18, 0
      %s441 = sadd.s32 %s440, %s438
      %s442 = smul.addr %s441, 4
      %s443 = scalar_lea.vmem %s2, %s442
      // Predicated region
      $region29: #{bert_for_classification.12} parent=27 // pred_check
        %p444 = pneg %p99
      $region30: #{bert_for_classification.12} parent=27 // pred_check_branch
        %446 = sbr.rel (%p444) target = $region32
      $region31: #{bert_for_classification.12} parent=27 // pred_region
        _
      $region32: #{bert_for_classification.12} parent=27 // pred_fallthru
        _
    $region28: #{bert_for_classification.12} parent=5 // pred_fallthru
      _
    %p447 = scmp.le.s32.totalorder 2, %s8
    // Predicated region
    $region33: #{bert_for_classification.12} parent=5 // pred_check
      %p448 = pneg %p447
    $region34: #{bert_for_classification.12} parent=5 // pred_check_branch
      %450 = sbr.rel (%p448) target = $region36
    $region35: #{bert_for_classification.12} parent=5 // pred_region
      %s451 = ssub.s32 %s8, 2
      // Predicated region
      $region37: #{bert_for_classification.12} parent=35 // pred_check
        %p452 = pneg %p105
      $region38: #{bert_for_classification.12} parent=35 // pred_check_branch
        %454 = sbr.rel (%p452) target = $region40
      $region39: #{bert_for_classification.12} parent=35 // pred_region
        %p455 = scmp.lt.s32.totalorder %s19, 1
        %s456 = scalar_select %p455, %s19, 1
        %p457 = scmp.lt.s32.totalorder %s20, 0
        %s458 = scalar_select %p457, %s20, 0
        %s459 = sadd.s32 %s458, %s456
        %s460 = smul.addr %s459, 4
        %s461 = scalar_lea.vmem %s2, %s460
      $region40: #{bert_for_classification.12} parent=35 // pred_fallthru
        _
    $region36: #{bert_for_classification.12} parent=5 // pred_fallthru
      _
  $region6: #{bert_for_classification.12} parent=0 // loop_footer
    %s12 = sadd.s32 1, %s8
  $region7: #{bert_for_classification.12} parent=0 // loop_footer_branch
    %7 = sbr.rel target = $region3
  $region8: #{bert_for_classification.12} parent=0 // loop_exit
    _

// kernel: bert_for_classification.13
$region0: #{bert_for_classification.13}
  #allocation0 [shape = 'u32[]', space=smem, size = 0x4, offset = 0x4, fixed_abs, tag = 'smem constant byte address 0x4 - core index']
  #allocation1 [shape = 'u32[144,128]{1,0:T(1,128)}', space=vmem, size = 0x12000, scoped, tag = 'internal scratch']
  #allocation2 [shape = 'f32[16,32]{1,0:T(8,128)}', space=vmem, size = 0x2000, scoped, tag = 'scratch operand']
  %s0 = inlined_call_operand.vmem [shape: bf16[16,32], index: 0, kind: input, shape index: {}]
  %s1 = inlined_call_operand.vmem [shape: bf16[32,32], index: 1, kind: input, shape index: {}]
  %s2 = inlined_call_operand.vmem [shape: f32[1,32], index: 2, kind: input, shape index: {}]
  %s3 = inlined_call_operand.vmem [shape: bf16[16,32], index: 3, kind: input, shape index: {}]
  %s4 = inlined_call_operand.vmem [shape: f32[1,32], index: 4, kind: input, shape index: {}]
  %s5 = inlined_call_operand.vmem [shape: f32[1,32], index: 5, kind: input, shape index: {}]
  %s6 = inlined_call_operand.vmem [shape: bf16[16,32], index: 6, kind: output, shape index: {}]
  %s7 = sld [smem:[#allocation0]]
  $region42: #{bert_for_classification.13} parent=0
    _
  %s9 = ssub.s32 1, %s7
  %s10 = scalar_select 0, %s9, %s7
  // Predicated region
  $region2: #{bert_for_classification.13} parent=0 // pred_check
    _
  $region3: #{bert_for_classification.13} parent=0 // pred_check_branch
    %12 = sbr.rel (0) target = $region5
  $region4: #{bert_for_classification.13} parent=0 // pred_region
    _
  $region5: #{bert_for_classification.13} parent=0 // pred_fallthru
    _
  // Predicated region
  $region6: #{bert_for_classification.13} parent=0 // pred_check
    _
  $region7: #{bert_for_classification.13} parent=0 // pred_check_branch
    %14 = sbr.rel (0) target = $region9
  $region8: #{bert_for_classification.13} parent=0 // pred_region
    _
  $region9: #{bert_for_classification.13} parent=0 // pred_fallthru
    _
  // Predicated region
  $region10: #{bert_for_classification.13} parent=0 // pred_check
    _
  $region11: #{bert_for_classification.13} parent=0 // pred_check_branch
    %16 = sbr.rel (0) target = $region13
  $region12: #{bert_for_classification.13} parent=0 // pred_region
    _
  $region13: #{bert_for_classification.13} parent=0 // pred_fallthru
    _
  // Predicated region
  $region14: #{bert_for_classification.13} parent=0 // pred_check
    _
  $region15: #{bert_for_classification.13} parent=0 // pred_check_branch
    %18 = sbr.rel (0) target = $region17
  $region16: #{bert_for_classification.13} parent=0 // pred_region
    _
  $region17: #{bert_for_classification.13} parent=0 // pred_fallthru
    _
  // Predicated region
  $region18: #{bert_for_classification.13} parent=0 // pred_check
    _
  $region19: #{bert_for_classification.13} parent=0 // pred_check_branch
    %20 = sbr.rel (0) target = $region21
  $region20: #{bert_for_classification.13} parent=0 // pred_region
    _
  $region21: #{bert_for_classification.13} parent=0 // pred_fallthru
    _
  // Predicated region
  $region22: #{bert_for_classification.13} parent=0 // pred_check
    _
  $region23: #{bert_for_classification.13} parent=0 // pred_check_branch
    %22 = sbr.rel (0) target = $region25
  $region24: #{bert_for_classification.13} parent=0 // pred_region
    _
  $region25: #{bert_for_classification.13} parent=0 // pred_fallthru
    _
  %p24 = scmp.eq.s32.totalorder 0, 0
  // Predicated region
  $region26: #{bert_for_classification.13} parent=0 // pred_check
    %p25 = pneg %p24
  $region27: #{bert_for_classification.13} parent=0 // pred_check_branch
    %27 = sbr.rel (%p25) target = $region29
  $region28: #{bert_for_classification.13} parent=0 // pred_region
    %vm28 = vcmask 261120
    %29 = vst.msk [vmem:[#allocation2] sm:$0xff] %vm28, 0.0
    %30 = vst.msk [vmem:[#allocation2 + $0x8] sm:$0xff] %vm28, 0.0
  $region29: #{bert_for_classification.13} parent=0 // pred_fallthru
    _
  %v31 = vld [vmem:[#allocation2] sm:$0xff]
  %v32 = vld [vmem:[#allocation2 + $0x8] sm:$0xff]
  %v33 = vld [vmem:[%s0] sm:$0xf]
  %v34 = vld [vmem:[%s0 + $0x4] sm:$0xf]
  %v35 = vld [vmem:[%s1] sm:$0xf]
  %v36 = vld [vmem:[%s1 + $0x4] sm:$0xf]
  %v37 = vld [vmem:[%s1 + $0x8] sm:$0xf]
  %v38 = vld [vmem:[%s1 + $0xc] sm:$0xf]
  %v41 = vunpack.c.l.b16 %v33
  %v42 = vunpack.c.l.b16 %v34
  %v43 = vpack.c.b16 %v42, %v41
  %v48 = vunpack.c.l.b16 %v35
  %v49 = vunpack.c.l.b16 %v36
  %v50 = vunpack.c.l.b16 %v37
  %v51 = vunpack.c.l.b16 %v38
  %v52 = vpack.c.b16 %v49, %v48
  %v53 = vpack.c.b16 %v51, %v50
  %vm56 = vcmask 261120
  %v58 = vsel %vm56, %v43, 0
  %60 = vmatprep.subr.bf16.mxu0 0
  %61 = vmatpush1.bf16.msra.mxu0 %v52
  %62 = vmatprep.subr.bf16.mxu0 0
  %63 = vmatpush1.bf16.msra.mxu0 %v53
  %64 = vmatprep.subr.bf16.mxu0 0
  %65 = vmatpush1.bf16.msra.mxu0 0
  %66 = vmatprep.subr.bf16.mxu0 0
  %67 = vmatpush1.bf16.msra.mxu0 0
  %68 = vmatprep.subr.bf16.mxu0 0
  %69 = vmatpush1.bf16.msra.mxu0 0
  %70 = vmatprep.subr.bf16.mxu0 0
  %71 = vmatpush1.bf16.msra.mxu0 0
  %72 = vmatprep.subr.bf16.mxu0 0
  %73 = vmatpush1.bf16.msra.mxu0 0
  %74 = vmatprep.subr.bf16.mxu0 0
  %75 = vmatpush1.bf16.msra.mxu0 0
  %76 = vmatprep.subr.bf16.mxu0 0
  %77 = vmatpush1.bf16.msra.mxu0 0
  %78 = vmatprep.subr.bf16.mxu0 0
  %79 = vmatpush1.bf16.msra.mxu0 0
  %80 = vmatprep.subr.bf16.mxu0 0
  %81 = vmatpush1.bf16.msra.mxu0 0
  %82 = vmatprep.subr.bf16.mxu0 0
  %83 = vmatpush1.bf16.msra.mxu0 0
  %84 = vmatprep.subr.bf16.mxu0 0
  %85 = vmatpush1.bf16.msra.mxu0 0
  %86 = vmatprep.subr.bf16.mxu0 0
  %87 = vmatpush1.bf16.msra.mxu0 0
  %88 = vmatprep.subr.bf16.mxu0 0
  %89 = vmatpush1.bf16.msra.mxu0 0
  %90 = vmatprep.subr.bf16.mxu0 0
  %91 = vmatpush1.bf16.msra.mxu0 0
  %92 = vmatprep.mubr.bf16.mxu0 0
  %93 = vmatmul.mubr.bf16.gmra.mrb[0].mxu0 %v58
  %v94 = vpop.f32.mrb[0].mxu0
  %v95 = vadd.f32 0.0, %v94
  %v96 = vpop.f32.mrb[0].mxu0
  %v97 = vpop.f32.mrb[0].mxu0
  %v98 = vadd.f32 0.0, %v97
  %v99 = vpop.f32.mrb[0].mxu0
  %100 = vdwg.mxu0
  %v101 = vadd.f32 %v31, %v95
  %v102 = vadd.f32 %v32, %v98
  %103 = vst.msk [vmem:[#allocation2] sm:$0xff] %vm56, %v101
  %104 = vst.msk [vmem:[#allocation2 + $0x8] sm:$0xff] %vm56, %v102
  // Predicated region
  $region30: #{bert_for_classification.13} parent=0 // pred_check
    %p105 = pneg %p24
  $region31: #{bert_for_classification.13} parent=0 // pred_check_branch
    %107 = sbr.rel (%p105) target = $region33
  $region32: #{bert_for_classification.13} parent=0 // pred_region
    %v108 = vld [vmem:[#allocation2] sm:$0xff]
    %v109 = vld [vmem:[#allocation2 + $0x8] sm:$0xff]
    %v110 = vld [vmem:[%s2] sm:$0x1]
    %v112 = vlaneseq
    %v113 = vshrl.u32 %v112, 7
    %v114 = vsub.s32 0, %v113
    %v115 = vrot.slane %v110, %v114
    %v117 = vadd.f32 %v108, %v115
    %v118 = vadd.f32 %v109, %v115
    %v119 = vld [vmem:[%s3] sm:$0xf]
    %v120 = vld [vmem:[%s3 + $0x4] sm:$0xf]
    %v121 = vunpack.c.l.bf16 %v119
    %v122 = vunpack.c.l.bf16 %v120
    %v123 = vadd.f32 %v117, %v121
    %v124 = vadd.f32 %v118, %v122
    %v125 = vsel %vm56, %v123, 0.0
    %126 = vadd.xlane.f32.xlu0 %v125
    %v127 = vpop.xlane.xlu0 %126
    %v128 = vsel %vm56, %v124, 0.0
    %129 = vadd.xlane.f32.xlu0 %v128
    %v130 = vpop.xlane.xlu0 %129
    %v131 = vrcp.pop 32.0
    %v132 = vmul.f32 %v127, %v131
    %v133 = vmul.f32 %v130, %v131
    %v134 = vsub.f32 %v123, %v132
    %v135 = vsub.f32 %v124, %v133
    %v136 = vmul.f32 %v134, %v134
    %v137 = vmul.f32 %v135, %v135
    %v138 = vsel %vm56, %v136, 0.0
    %139 = vadd.xlane.f32.xlu0 %v138
    %v140 = vpop.xlane.xlu0 %139
    %v141 = vsel %vm56, %v137, 0.0
    %142 = vadd.xlane.f32.xlu0 %v141
    %v143 = vpop.xlane.xlu0 %142
    %v144 = vmul.f32 %v140, %v131
    %v145 = vmul.f32 %v143, %v131
    %v146 = vadd.f32 %v144, 1e-12
    %v147 = vadd.f32 %v145, 1e-12
    %v148 = vrsqrt.pop %v146
    %v149 = vrsqrt.pop %v147
    %v150 = vmul.f32 %v134, %v148
    %v151 = vmul.f32 %v135, %v149
    %v152 = vld [vmem:[%s4] sm:$0x1]
    %v154 = vlaneseq
    %v155 = vshrl.u32 %v154, 7
    %v156 = vsub.s32 0, %v155
    %v157 = vrot.slane %v152, %v156
    %v159 = vmul.f32 %v150, %v157
    %v160 = vmul.f32 %v151, %v157
    %v161 = vld [vmem:[%s5] sm:$0x1]
    %v163 = vlaneseq
    %v164 = vshrl.u32 %v163, 7
    %v165 = vsub.s32 0, %v164
    %v166 = vrot.slane %v161, %v165
    %v168 = vadd.f32 %v159, %v166
    %v169 = vadd.f32 %v160, %v166
    %v170 = vpack.c.bf16 %v169, %v168
    %v172 = vunpack.c.l.b16 %v170
    %v173 = vunpack.c.h.b16 %v170
    %v174 = vpack.c.b16 %v172, %v172
    %v175 = vpack.c.b16 %v173, %v173
    %vm178 = vcmask 257024
    %179 = vst.msk [vmem:[%s6] sm:$0xf] %vm178, %v174
    %180 = vst.msk [vmem:[%s6 + $0x4] sm:$0xf] %vm178, %v175
  $region33: #{bert_for_classification.13} parent=0 // pred_fallthru
    _
  // Predicated region
  $region34: #{bert_for_classification.13} parent=0 // pred_check
    _
  $region35: #{bert_for_classification.13} parent=0 // pred_check_branch
    %182 = sbr.rel (0) target = $region37
  $region36: #{bert_for_classification.13} parent=0 // pred_region
    _
  $region37: #{bert_for_classification.13} parent=0 // pred_fallthru
    _
  // Predicated region
  $region38: #{bert_for_classification.13} parent=0 // pred_check
    _
  $region39: #{bert_for_classification.13} parent=0 // pred_check_branch
    %184 = sbr.rel (0) target = $region41
  $region40: #{bert_for_classification.13} parent=0 // pred_region
    _
  $region41: #{bert_for_classification.13} parent=0 // pred_fallthru
    _

// kernel: bert_for_classification.19
$region0: #{bert_for_classification.19}
  #allocation0 [shape = 'u32[]', space=smem, size = 0x4, offset = 0x4, fixed_abs, tag = 'smem constant byte address 0x4 - core index']
  #allocation1 [shape = 'u32[144,128]{1,0:T(1,128)}', space=vmem, size = 0x12000, scoped, tag = 'internal scratch']
  #allocation2 [shape = 'f32[2,32]{1,0:T(2,128)}', space=vmem, size = 0x400, scoped, tag = 'scratch operand']
  %s0 = inlined_call_operand.vmem [shape: bf16[2,32], index: 0, kind: input, shape index: {}]
  %s1 = inlined_call_operand.vmem [shape: bf16[32,32], index: 1, kind: input, shape index: {}]
  %s2 = inlined_call_operand.vmem [shape: f32[1,32], index: 2, kind: input, shape index: {}]
  %s3 = inlined_call_operand.vmem [shape: f32[2,32], index: 3, kind: output, shape index: {}]
  %s4 = sld [smem:[#allocation0]]
  $region30: #{bert_for_classification.19} parent=0
    _
  %s6 = ssub.s32 1, %s4
  %s7 = scalar_select 0, %s6, %s4
  // Predicated region
  $region2: #{bert_for_classification.19} parent=0 // pred_check
    _
  $region3: #{bert_for_classification.19} parent=0 // pred_check_branch
    %9 = sbr.rel (0) target = $region5
  $region4: #{bert_for_classification.19} parent=0 // pred_region
    _
  $region5: #{bert_for_classification.19} parent=0 // pred_fallthru
    _
  // Predicated region
  $region6: #{bert_for_classification.19} parent=0 // pred_check
    _
  $region7: #{bert_for_classification.19} parent=0 // pred_check_branch
    %11 = sbr.rel (0) target = $region9
  $region8: #{bert_for_classification.19} parent=0 // pred_region
    _
  $region9: #{bert_for_classification.19} parent=0 // pred_fallthru
    _
  // Predicated region
  $region10: #{bert_for_classification.19} parent=0 // pred_check
    _
  $region11: #{bert_for_classification.19} parent=0 // pred_check_branch
    %13 = sbr.rel (0) target = $region13
  $region12: #{bert_for_classification.19} parent=0 // pred_region
    _
  $region13: #{bert_for_classification.19} parent=0 // pred_fallthru
    _
  %p15 = scmp.eq.s32.totalorder 0, 0
  // Predicated region
  $region14: #{bert_for_classification.19} parent=0 // pred_check
    %p16 = pneg %p15
  $region15: #{bert_for_classification.19} parent=0 // pred_check_branch
    %18 = sbr.rel (%p16) target = $region17
  $region16: #{bert_for_classification.19} parent=0 // pred_region
    %vm19 = vcmask 254976
    %20 = vst.msk [vmem:[#allocation2] sm:$0x3] %vm19, 0.0
  $region17: #{bert_for_classification.19} parent=0 // pred_fallthru
    _
  %v21 = vld [vmem:[#allocation2] sm:$0x3]
  %v22 = vld [vmem:[%s0] sm:$0x1]
  %v23 = vld [vmem:[%s1] sm:$0xf]
  %v24 = vld [vmem:[%s1 + $0x4] sm:$0xf]
  %v25 = vld [vmem:[%s1 + $0x8] sm:$0xf]
  %v26 = vld [vmem:[%s1 + $0xc] sm:$0xf]
  %v31 = vunpack.c.l.b16 %v23
  %v32 = vunpack.c.l.b16 %v24
  %v33 = vunpack.c.l.b16 %v25
  %v34 = vunpack.c.l.b16 %v26
  %v35 = vpack.c.b16 %v32, %v31
  %v36 = vpack.c.b16 %v34, %v33
  %vm39 = vcmask 261120
  %v41 = vsel %vm39, %v22, 0
  %43 = vmatprep.subr.bf16.mxu0 0
  %44 = vmatpush1.bf16.msra.mxu0 %v35
  %45 = vmatprep.subr.bf16.mxu0 0
  %46 = vmatpush1.bf16.msra.mxu0 %v36
  %47 = vmatprep.subr.bf16.mxu0 0
  %48 = vmatpush1.bf16.msra.mxu0 0
  %49 = vmatprep.subr.bf16.mxu0 0
  %50 = vmatpush1.bf16.msra.mxu0 0
  %51 = vmatprep.subr.bf16.mxu0 0
  %52 = vmatpush1.bf16.msra.mxu0 0
  %53 = vmatprep.subr.bf16.mxu0 0
  %54 = vmatpush1.bf16.msra.mxu0 0
  %55 = vmatprep.subr.bf16.mxu0 0
  %56 = vmatpush1.bf16.msra.mxu0 0
  %57 = vmatprep.subr.bf16.mxu0 0
  %58 = vmatpush1.bf16.msra.mxu0 0
  %59 = vmatprep.subr.bf16.mxu0 0
  %60 = vmatpush1.bf16.msra.mxu0 0
  %61 = vmatprep.subr.bf16.mxu0 0
  %62 = vmatpush1.bf16.msra.mxu0 0
  %63 = vmatprep.subr.bf16.mxu0 0
  %64 = vmatpush1.bf16.msra.mxu0 0
  %65 = vmatprep.subr.bf16.mxu0 0
  %66 = vmatpush1.bf16.msra.mxu0 0
  %67 = vmatprep.subr.bf16.mxu0 0
  %68 = vmatpush1.bf16.msra.mxu0 0
  %69 = vmatprep.subr.bf16.mxu0 0
  %70 = vmatpush1.bf16.msra.mxu0 0
  %71 = vmatprep.subr.bf16.mxu0 0
  %72 = vmatpush1.bf16.msra.mxu0 0
  %73 = vmatprep.subr.bf16.mxu0 0
  %74 = vmatpush1.bf16.msra.mxu0 0
  %75 = vmatprep.mubr.bf16.mxu0 0
  %76 = vmatmul.mubr.bf16.gmra.mrb[0].mxu0 %v41
  %v77 = vpop.f32.mrb[0].mxu0
  %v78 = vadd.f32 0.0, %v77
  %v79 = vpop.f32.mrb[0].mxu0
  %v80 = vpop.f32.mrb[0].mxu0
  %v81 = vpop.f32.mrb[0].mxu0
  %82 = vdwg.mxu0
  %v83 = vadd.f32 %v21, %v78
  %vm84 = vcmask 254976
  %85 = vst.msk [vmem:[#allocation2] sm:$0x3] %vm84, %v83
  // Predicated region
  $region18: #{bert_for_classification.19} parent=0 // pred_check
    %p86 = pneg %p15
  $region19: #{bert_for_classification.19} parent=0 // pred_check_branch
    %88 = sbr.rel (%p86) target = $region21
  $region20: #{bert_for_classification.19} parent=0 // pred_region
    %v89 = vld [vmem:[#allocation2] sm:$0x3]
    %v90 = vld [vmem:[%s2] sm:$0x1]
    %v92 = vlaneseq
    %v93 = vshrl.u32 %v92, 7
    %v94 = vsub.s32 0, %v93
    %v95 = vrot.slane %v90, %v94
    %v97 = vadd.f32 %v89, %v95
    %v98 = vtanh.pop %v97
    %99 = vst.msk [vmem:[%s3] sm:$0x3] %vm84, %v98
  $region21: #{bert_for_classification.19} parent=0 // pred_fallthru
    _
  // Predicated region
  $region22: #{bert_for_classification.19} parent=0 // pred_check
    _
  $region23: #{bert_for_classification.19} parent=0 // pred_check_branch
    %101 = sbr.rel (0) target = $region25
  $region24: #{bert_for_classification.19} parent=0 // pred_region
    _
  $region25: #{bert_for_classification.19} parent=0 // pred_fallthru
    _
  // Predicated region
  $region26: #{bert_for_classification.19} parent=0 // pred_check
    _
  $region27: #{bert_for_classification.19} parent=0 // pred_check_branch
    %103 = sbr.rel (0) target = $region29
  $region28: #{bert_for_classification.19} parent=0 // pred_region
    _
  $region29: #{bert_for_classification.19} parent=0 // pred_fallthru
    _

// kernel: bert_for_classification.14
$region0: #{bert_for_classification.14}
  #allocation0 [shape = 'u32[]', space=smem, size = 0x4, offset = 0x4, fixed_abs, tag = 'smem constant byte address 0x4 - core index']
  #allocation1 [shape = 'u32[144,128]{1,0:T(1,128)}', space=vmem, size = 0x12000, scoped, tag = 'internal scratch']
  #allocation2 [shape = 'f32[16,32]{1,0:T(8,128)}', space=vmem, size = 0x2000, scoped, tag = 'scratch operand']
  %s0 = inlined_call_operand.vmem [shape: bf16[16,32], index: 0, kind: input, shape index: {}, may-alias: {0,5}]
  %s1 = inlined_call_operand.vmem [shape: bf16[32,64], index: 1, kind: input, shape index: {}]
  %s2 = inlined_call_operand.vmem [shape: f32[1,64], index: 2, kind: input, shape index: {}]
  %s3 = inlined_call_operand.vmem [shape: bf16[64,32], index: 3, kind: input, shape index: {}]
  %s4 = inlined_call_operand.vmem [shape: f32[1,32], index: 4, kind: input, shape index: {}]
  %s5 = inlined_call_operand.vmem [shape: bf16[16,32], index: 5, kind: input, shape index: {}, may-alias: {0,5}]
  %s6 = inlined_call_operand.vmem [shape: f32[1,32], index: 6, kind: input, shape index: {}]
  %s7 = inlined_call_operand.vmem [shape: f32[1,32], index: 7, kind: input, shape index: {}]
  %s8 = inlined_call_operand.vmem [shape: bf16[16,32], index: 8, kind: output, shape index: {}]
  %s9 = sld [smem:[#allocation0]]
  $region50: #{bert_for_classification.14} parent=0
    _
  %s11 = ssub.s32 1, %s9
  %s12 = scalar_select 0, %s11, %s9
  // Predicated region
  $region2: #{bert_for_classification.14} parent=0 // pred_check
    _
  $region3: #{bert_for_classification.14} parent=0 // pred_check_branch
    %14 = sbr.rel (0) target = $region5
  $region4: #{bert_for_classification.14} parent=0 // pred_region
    _
  $region5: #{bert_for_classification.14} parent=0 // pred_fallthru
    _
  // Predicated region
  $region6: #{bert_for_classification.14} parent=0 // pred_check
    _
  $region7: #{bert_for_classification.14} parent=0 // pred_check_branch
    %16 = sbr.rel (0) target = $region9
  $region8: #{bert_for_classification.14} parent=0 // pred_region
    _
  $region9: #{bert_for_classification.14} parent=0 // pred_fallthru
    _
  // Predicated region
  $region10: #{bert_for_classification.14} parent=0 // pred_check
    _
  $region11: #{bert_for_classification.14} parent=0 // pred_check_branch
    %18 = sbr.rel (0) target = $region13
  $region12: #{bert_for_classification.14} parent=0 // pred_region
    _
  $region13: #{bert_for_classification.14} parent=0 // pred_fallthru
    _
  // Predicated region
  $region14: #{bert_for_classification.14} parent=0 // pred_check
    _
  $region15: #{bert_for_classification.14} parent=0 // pred_check_branch
    %20 = sbr.rel (0) target = $region17
  $region16: #{bert_for_classification.14} parent=0 // pred_region
    _
  $region17: #{bert_for_classification.14} parent=0 // pred_fallthru
    _
  // Predicated region
  $region18: #{bert_for_classification.14} parent=0 // pred_check
    _
  $region19: #{bert_for_classification.14} parent=0 // pred_check_branch
    %22 = sbr.rel (0) target = $region21
  $region20: #{bert_for_classification.14} parent=0 // pred_region
    _
  $region21: #{bert_for_classification.14} parent=0 // pred_fallthru
    _
  // Predicated region
  $region22: #{bert_for_classification.14} parent=0 // pred_check
    _
  $region23: #{bert_for_classification.14} parent=0 // pred_check_branch
    %24 = sbr.rel (0) target = $region25
  $region24: #{bert_for_classification.14} parent=0 // pred_region
    _
  $region25: #{bert_for_classification.14} parent=0 // pred_fallthru
    _
  // Predicated region
  $region26: #{bert_for_classification.14} parent=0 // pred_check
    _
  $region27: #{bert_for_classification.14} parent=0 // pred_check_branch
    %26 = sbr.rel (0) target = $region29
  $region28: #{bert_for_classification.14} parent=0 // pred_region
    _
  $region29: #{bert_for_classification.14} parent=0 // pred_fallthru
    _
  // Predicated region
  $region30: #{bert_for_classification.14} parent=0 // pred_check
    _
  $region31: #{bert_for_classification.14} parent=0 // pred_check_branch
    %28 = sbr.rel (0) target = $region33
  $region32: #{bert_for_classification.14} parent=0 // pred_region
    _
  $region33: #{bert_for_classification.14} parent=0 // pred_fallthru
    _
  %p30 = scmp.eq.s32.totalorder 0, 0
  // Predicated region
  $region34: #{bert_for_classification.14} parent=0 // pred_check
    %p31 = pneg %p30
  $region35: #{bert_for_classification.14} parent=0 // pred_check_branch
    %33 = sbr.rel (%p31) target = $region37
  $region36: #{bert_for_classification.14} parent=0 // pred_region
    %vm34 = vcmask 261120
    %35 = vst.msk [vmem:[#allocation2] sm:$0xff] %vm34, 0.0
    %36 = vst.msk [vmem:[#allocation2 + $0x8] sm:$0xff] %vm34, 0.0
  $region37: #{bert_for_classification.14} parent=0 // pred_fallthru
    _
  %v37 = vld [vmem:[%s0] sm:$0xf]
  %v38 = vld [vmem:[%s0 + $0x4] sm:$0xf]
  %v39 = vld [vmem:[%s1] sm:$0xf]
  %v40 = vld [vmem:[%s1 + $0x4] sm:$0xf]
  %v41 = vld [vmem:[%s1 + $0x8] sm:$0xf]
  %v42 = vld [vmem:[%s1 + $0xc] sm:$0xf]
  %v43 = vld [vmem:[%s2] sm:$0x1]
  %v45 = vlaneseq
  %v46 = vshrl.u32 %v45, 7
  %v47 = vsub.s32 0, %v46
  %v48 = vrot.slane %v43, %v47
  %v52 = vunpack.c.l.b16 %v37
  %v53 = vunpack.c.l.b16 %v38
  %v54 = vpack.c.b16 %v53, %v52
  %v59 = vunpack.c.l.b16 %v39
  %v60 = vunpack.c.l.b16 %v40
  %v61 = vunpack.c.l.b16 %v41
  %v62 = vunpack.c.l.b16 %v42
  %v63 = vpack.c.b16 %v60, %v59
  %v64 = vpack.c.b16 %v62, %v61
  %vm67 = vcmask 261120
  %v69 = vsel %vm67, %v54, 0
  %71 = vmatprep.subr.bf16.mxu0 0
  %72 = vmatpush1.bf16.msra.mxu0 %v63
  %73 = vmatprep.subr.bf16.mxu0 0
  %74 = vmatpush1.bf16.msra.mxu0 %v64
  %75 = vmatprep.subr.bf16.mxu0 0
  %76 = vmatpush1.bf16.msra.mxu0 0
  %77 = vmatprep.subr.bf16.mxu0 0
  %78 = vmatpush1.bf16.msra.mxu0 0
  %79 = vmatprep.subr.bf16.mxu0 0
  %80 = vmatpush1.bf16.msra.mxu0 0
  %81 = vmatprep.subr.bf16.mxu0 0
  %82 = vmatpush1.bf16.msra.mxu0 0
  %83 = vmatprep.subr.bf16.mxu0 0
  %84 = vmatpush1.bf16.msra.mxu0 0
  %85 = vmatprep.subr.bf16.mxu0 0
  %86 = vmatpush1.bf16.msra.mxu0 0
  %87 = vmatprep.subr.bf16.mxu0 0
  %88 = vmatpush1.bf16.msra.mxu0 0
  %89 = vmatprep.subr.bf16.mxu0 0
  %90 = vmatpush1.bf16.msra.mxu0 0
  %91 = vmatprep.subr.bf16.mxu0 0
  %92 = vmatpush1.bf16.msra.mxu0 0
  %93 = vmatprep.subr.bf16.mxu0 0
  %94 = vmatpush1.bf16.msra.mxu0 0
  %95 = vmatprep.subr.bf16.mxu0 0
  %96 = vmatpush1.bf16.msra.mxu0 0
  %97 = vmatprep.subr.bf16.mxu0 0
  %98 = vmatpush1.bf16.msra.mxu0 0
  %99 = vmatprep.subr.bf16.mxu0 0
  %100 = vmatpush1.bf16.msra.mxu0 0
  %101 = vmatprep.subr.bf16.mxu0 0
  %102 = vmatpush1.bf16.msra.mxu0 0
  %103 = vmatprep.mubr.bf16.mxu0 0
  %104 = vmatmul.mubr.bf16.gmra.mrb[0].mxu0 %v69
  %v105 = vpop.f32.mrb[0].mxu0
  %v106 = vadd.f32 %v48, %v105
  %v107 = vpop.f32.mrb[0].mxu0
  %v108 = vpop.f32.mrb[0].mxu0
  %v109 = vadd.f32 %v48, %v108
  %v110 = vpop.f32.mrb[0].mxu0
  %111 = vdwg.mxu0
  %v112 = vmul.f32 %v106, 0.5
  %v113 = vmul.f32 %v109, 0.5
  %v114 = vmul.f32 %v106, 0.044715
  %v115 = vmul.f32 %v109, 0.044715
  %v116 = vmul.f32 %v114, %v106
  %v117 = vmul.f32 %v115, %v109
  %v118 = vmul.f32 %v116, %v106
  %v119 = vmul.f32 %v117, %v109
  %v120 = vadd.f32 %v106, %v118
  %v121 = vadd.f32 %v109, %v119
  %v122 = vmul.f32 %v120, 0.7978846
  %v123 = vmul.f32 %v121, 0.7978846
  %v124 = vtanh.pop %v122
  %v125 = vtanh.pop %v123
  %v126 = vadd.f32 %v124, 1.0
  %v127 = vadd.f32 %v125, 1.0
  %v128 = vmul.f32 %v112, %v126
  %v129 = vmul.f32 %v113, %v127
  %v130 = vld [vmem:[#allocation2] sm:$0xff]
  %v131 = vld [vmem:[#allocation2 + $0x8] sm:$0xff]
  %v132 = vpack.c.bf16 %v129, %v128
  %v133 = vld [vmem:[%s3] sm:$0xf]
  %v134 = vld [vmem:[%s3 + $0x4] sm:$0xf]
  %v135 = vld [vmem:[%s3 + $0x8] sm:$0xf]
  %v136 = vld [vmem:[%s3 + $0xc] sm:$0xf]
  %v137 = vld [vmem:[%s3 + $0x10] sm:$0xf]
  %v138 = vld [vmem:[%s3 + $0x14] sm:$0xf]
  %v139 = vld [vmem:[%s3 + $0x18] sm:$0xf]
  %v140 = vld [vmem:[%s3 + $0x1c] sm:$0xf]
  %v149 = vunpack.c.l.b16 %v133
  %v150 = vunpack.c.l.b16 %v134
  %v151 = vunpack.c.l.b16 %v135
  %v152 = vunpack.c.l.b16 %v136
  %v153 = vunpack.c.l.b16 %v137
  %v154 = vunpack.c.l.b16 %v138
  %v155 = vunpack.c.l.b16 %v139
  %v156 = vunpack.c.l.b16 %v140
  %v157 = vpack.c.b16 %v150, %v149
  %v158 = vpack.c.b16 %v152, %v151
  %v159 = vpack.c.b16 %v154, %v153
  %v160 = vpack.c.b16 %v156, %v155
  %vm165 = vcmask 523264
  %v167 = vsel %vm165, %v132, 0
  %169 = vmatprep.subr.bf16.mxu0 0
  %170 = vmatpush1.bf16.msra.mxu0 %v157
  %171 = vmatprep.subr.bf16.mxu0 0
  %172 = vmatpush1.bf16.msra.mxu0 %v158
  %173 = vmatprep.subr.bf16.mxu0 0
  %174 = vmatpush1.bf16.msra.mxu0 %v159
  %175 = vmatprep.subr.bf16.mxu0 0
  %176 = vmatpush1.bf16.msra.mxu0 %v160
  %177 = vmatprep.subr.bf16.mxu0 0
  %178 = vmatpush1.bf16.msra.mxu0 0
  %179 = vmatprep.subr.bf16.mxu0 0
  %180 = vmatpush1.bf16.msra.mxu0 0
  %181 = vmatprep.subr.bf16.mxu0 0
  %182 = vmatpush1.bf16.msra.mxu0 0
  %183 = vmatprep.subr.bf16.mxu0 0
  %184 = vmatpush1.bf16.msra.mxu0 0
  %185 = vmatprep.subr.bf16.mxu0 0
  %186 = vmatpush1.bf16.msra.mxu0 0
  %187 = vmatprep.subr.bf16.mxu0 0
  %188 = vmatpush1.bf16.msra.mxu0 0
  %189 = vmatprep.subr.bf16.mxu0 0
  %190 = vmatpush1.bf16.msra.mxu0 0
  %191 = vmatprep.subr.bf16.mxu0 0
  %192 = vmatpush1.bf16.msra.mxu0 0
  %193 = vmatprep.subr.bf16.mxu0 0
  %194 = vmatpush1.bf16.msra.mxu0 0
  %195 = vmatprep.subr.bf16.mxu0 0
  %196 = vmatpush1.bf16.msra.mxu0 0
  %197 = vmatprep.subr.bf16.mxu0 0
  %198 = vmatpush1.bf16.msra.mxu0 0
  %199 = vmatprep.subr.bf16.mxu0 0
  %200 = vmatpush1.bf16.msra.mxu0 0
  %201 = vmatprep.mubr.bf16.mxu0 0
  %202 = vmatmul.mubr.bf16.gmra.mrb[0].mxu0 %v167
  %v203 = vpop.f32.mrb[0].mxu0
  %v204 = vadd.f32 0.0, %v203
  %v205 = vpop.f32.mrb[0].mxu0
  %v206 = vpop.f32.mrb[0].mxu0
  %v207 = vadd.f32 0.0, %v206
  %v208 = vpop.f32.mrb[0].mxu0
  %209 = vdwg.mxu0
  %v210 = vadd.f32 %v130, %v204
  %v211 = vadd.f32 %v131, %v207
  %212 = vst.msk [vmem:[#allocation2] sm:$0xff] %vm67, %v210
  %213 = vst.msk [vmem:[#allocation2 + $0x8] sm:$0xff] %vm67, %v211
  // Predicated region
  $region38: #{bert_for_classification.14} parent=0 // pred_check
    %p214 = pneg %p30
  $region39: #{bert_for_classification.14} parent=0 // pred_check_branch
    %216 = sbr.rel (%p214) target = $region41
  $region40: #{bert_for_classification.14} parent=0 // pred_region
    %v217 = vld [vmem:[#allocation2] sm:$0xff]
    %v218 = vld [vmem:[#allocation2 + $0x8] sm:$0xff]
    %v219 = vld [vmem:[%s4] sm:$0x1]
    %v221 = vlaneseq
    %v222 = vshrl.u32 %v221, 7
    %v223 = vsub.s32 0, %v222
    %v224 = vrot.slane %v219, %v223
    %v226 = vadd.f32 %v217, %v224
    %v227 = vadd.f32 %v218, %v224
    %v228 = vld [vmem:[%s5] sm:$0xf]
    %v229 = vld [vmem:[%s5 + $0x4] sm:$0xf]
    %v230 = vunpack.c.l.bf16 %v228
    %v231 = vunpack.c.l.bf16 %v229
    %v232 = vadd.f32 %v226, %v230
    %v233 = vadd.f32 %v227, %v231
    %v234 = vsel %vm67, %v232, 0.0
    %235 = vadd.xlane.f32.xlu0 %v234
    %v236 = vpop.xlane.xlu0 %235
    %v237 = vsel %vm67, %v233, 0.0
    %238 = vadd.xlane.f32.xlu0 %v237
    %v239 = vpop.xlane.xlu0 %238
    %v240 = vrcp.pop 32.0
    %v241 = vmul.f32 %v236, %v240
    %v242 = vmul.f32 %v239, %v240
    %v243 = vsub.f32 %v232, %v241
    %v244 = vsub.f32 %v233, %v242
    %v245 = vmul.f32 %v243, %v243
    %v246 = vmul.f32 %v244, %v244
    %v247 = vsel %vm67, %v245, 0.0
    %248 = vadd.xlane.f32.xlu0 %v247
    %v249 = vpop.xlane.xlu0 %248
    %v250 = vsel %vm67, %v246, 0.0
    %251 = vadd.xlane.f32.xlu0 %v250
    %v252 = vpop.xlane.xlu0 %251
    %v253 = vmul.f32 %v249, %v240
    %v254 = vmul.f32 %v252, %v240
    %v255 = vadd.f32 %v253, 1e-12
    %v256 = vadd.f32 %v254, 1e-12
    %v257 = vrsqrt.pop %v255
    %v258 = vrsqrt.pop %v256
    %v259 = vmul.f32 %v243, %v257
    %v260 = vmul.f32 %v244, %v258
    %v261 = vld [vmem:[%s6] sm:$0x1]
    %v263 = vlaneseq
    %v264 = vshrl.u32 %v263, 7
    %v265 = vsub.s32 0, %v264
    %v266 = vrot.slane %v261, %v265
    %v268 = vmul.f32 %v259, %v266
    %v269 = vmul.f32 %v260, %v266
    %v270 = vld [vmem:[%s7] sm:$0x1]
    %v272 = vlaneseq
    %v273 = vshrl.u32 %v272, 7
    %v274 = vsub.s32 0, %v273
    %v275 = vrot.slane %v270, %v274
    %v277 = vadd.f32 %v268, %v275
    %v278 = vadd.f32 %v269, %v275
    %v279 = vpack.c.bf16 %v278, %v277
    %v281 = vunpack.c.l.b16 %v279
    %v282 = vunpack.c.h.b16 %v279
    %v283 = vpack.c.b16 %v281, %v281
    %v284 = vpack.c.b16 %v282, %v282
    %vm287 = vcmask 257024
    %288 = vst.msk [vmem:[%s8] sm:$0xf] %vm287, %v283
    %289 = vst.msk [vmem:[%s8 + $0x4] sm:$0xf] %vm287, %v284
  $region41: #{bert_for_classification.14} parent=0 // pred_fallthru
    _
  // Predicated region
  $region42: #{bert_for_classification.14} parent=0 // pred_check
    _
  $region43: #{bert_for_classification.14} parent=0 // pred_check_branch
    %291 = sbr.rel (0) target = $region45
  $region44: #{bert_for_classification.14} parent=0 // pred_region
    _
  $region45: #{bert_for_classification.14} parent=0 // pred_fallthru
    _
  // Predicated region
  $region46: #{bert_for_classification.14} parent=0 // pred_check
    _
  $region47: #{bert_for_classification.14} parent=0 // pred_check_branch
    %293 = sbr.rel (0) target = $region49
  $region48: #{bert_for_classification.14} parent=0 // pred_region
    _
  $region49: #{bert_for_classification.14} parent=0 // pred_fallthru
    _

</llo_original>
